<compile_context>
chip_gen: v6e
topology: v6e:2x2x1
jax: 0.10.0
libtpu: 0.0.40
codegen_flags: <defaults>
</compile_context>

<pallas_src>
import math
import functools

import jax
import jax.numpy as jnp
from jax.experimental import pallas as pl
from jax.experimental.pallas import tpu as pltpu


def _round_up(x, m):
    return ((x + m - 1) // m) * m


# -----------------------------------------------------------------------------
# Kernel 1: tiled matmul + bias + fused activation epilogue (bf16 MXU, f32 acc)
# -----------------------------------------------------------------------------
def _matmul_bias_act_kernel(a_ref, w_ref, b_ref, o_ref, acc_ref, *, activation):
    k = pl.program_id(2)

    @pl.when(k == 0)
    def _init():
        acc_ref[...] = jnp.zeros_like(acc_ref)

    acc_ref[...] += jnp.dot(a_ref[...], w_ref[...],
                            preferred_element_type=jnp.float32)

    @pl.when(k == pl.num_programs(2) - 1)
    def _finalize():
        y = acc_ref[...] + b_ref[...]
        if activation == "relu":
            y = jnp.maximum(y, 0.0)
        elif activation == "sigmoid":
            y = jax.nn.sigmoid(y)
        o_ref[...] = y.astype(o_ref.dtype)


def matmul_bias_act(a, w, bias, activation="none", tm=256, tn=256, tk=512):
    """a: (M, K) , w: (K, N), bias: (N,) -> (M, N) f32, with fused bias+activation."""
    M, K = a.shape
    K2, N = w.shape
    assert K == K2
    tm = min(tm, _round_up(M, 8))
    tn = min(tn, _round_up(N, 128))
    tk = min(tk, _round_up(K, 128))
    Mp, Np, Kp = _round_up(M, tm), _round_up(N, tn), _round_up(K, tk)

    a_p = jnp.pad(a.astype(jnp.float32), ((0, Mp - M), (0, Kp - K))).astype(jnp.bfloat16)
    w_p = jnp.pad(w.astype(jnp.float32), ((0, Kp - K), (0, Np - N))).astype(jnp.bfloat16)
    b_p = jnp.pad(bias.astype(jnp.float32).reshape(1, N), ((0, 0), (0, Np - N)))

    out = pl.pallas_call(
        functools.partial(_matmul_bias_act_kernel, activation=activation),
        out_shape=jax.ShapeDtypeStruct((Mp, Np), jnp.float32),
        grid=(Mp // tm, Np // tn, Kp // tk),
        in_specs=[
            pl.BlockSpec((tm, tk), lambda i, j, k: (i, k)),
            pl.BlockSpec((tk, tn), lambda i, j, k: (k, j)),
            pl.BlockSpec((1, tn), lambda i, j, k: (0, j)),
        ],
        out_specs=pl.BlockSpec((tm, tn), lambda i, j, k: (i, j)),
        scratch_shapes=[pltpu.VMEM((tm, tn), jnp.float32)],
        compiler_params=pltpu.CompilerParams(
            dimension_semantics=("parallel", "parallel", "arbitrary")),
    )(a_p, w_p, b_p)
    return out[:M, :N]


def linear_wb(x, w, b, activation="none"):
    """torch-style linear: x (..., in), w (out, in), b (out,)."""
    shp = x.shape
    y = matmul_bias_act(x.reshape(-1, shp[-1]), jnp.transpose(w), b, activation)
    return y.reshape(shp[:-1] + (w.shape[0],))


# -----------------------------------------------------------------------------
# Kernel 2: multivariate-normal sampling (3x3 Cholesky + affine), channel-major
#   mean: (3, M), cov: (9, M) row-major, z: (3P, M) with row = p*3+axis
#   out : (3P, M) sampling points
# -----------------------------------------------------------------------------
def _mvn_sample_kernel(mean_ref, cov_ref, z_ref, out_ref, *, num_points):
    eps = 1e-9
    c00 = cov_ref[0:1, :]
    c10 = cov_ref[3:4, :]
    c11 = cov_ref[4:5, :]
    c20 = cov_ref[6:7, :]
    c21 = cov_ref[7:8, :]
    c22 = cov_ref[8:9, :]

    l00 = jnp.sqrt(jnp.maximum(c00, eps))
    il00 = 1.0 / l00
    l10 = c10 * il00
    l20 = c20 * il00
    l11 = jnp.sqrt(jnp.maximum(c11 - l10 * l10, eps))
    il11 = 1.0 / l11
    l21 = (c21 - l20 * l10) * il11
    l22 = jnp.sqrt(jnp.maximum(c22 - l20 * l20 - l21 * l21, eps))

    mx = mean_ref[0:1, :]
    my = mean_ref[1:2, :]
    mz = mean_ref[2:3, :]

    rows = []
    for p in range(num_points):
        zx = z_ref[3 * p + 0:3 * p + 1, :]
        zy = z_ref[3 * p + 1:3 * p + 2, :]
        zz = z_ref[3 * p + 2:3 * p + 3, :]
        rows.append(mx + l00 * zx)
        rows.append(my + l10 * zx + l11 * zy)
        rows.append(mz + l20 * zx + l21 * zy + l22 * zz)
    out_ref[...] = jnp.concatenate(rows, axis=0)


def mvn_sample(mean_cm, cov_cm, z, num_points, tile_m=512):
    _, M = mean_cm.shape
    tm = min(tile_m, _round_up(M, 128))
    Mp = _round_up(M, tm)
    pad = ((0, 0), (0, Mp - M))
    mean_p = jnp.pad(mean_cm.astype(jnp.float32), pad)
    cov_p = jnp.pad(cov_cm.astype(jnp.float32), pad)
    z_p = jnp.pad(z.astype(jnp.float32), pad)

    out = pl.pallas_call(
        functools.partial(_mvn_sample_kernel, num_points=num_points),
        out_shape=jax.ShapeDtypeStruct((3 * num_points, Mp), jnp.float32),
        grid=(Mp // tm,),
        in_specs=[
            pl.BlockSpec((3, tm), lambda i: (0, i)),
            pl.BlockSpec((9, tm), lambda i: (0, i)),
            pl.BlockSpec((3 * num_points, tm), lambda i: (0, i)),
        ],
        out_specs=pl.BlockSpec((3 * num_points, tm), lambda i: (0, i)),
        compiler_params=pltpu.CompilerParams(dimension_semantics=("parallel",)),
    )(mean_p, cov_p, z_p)
    return out[:, :M]


# -----------------------------------------------------------------------------
# Kernel 3: fused gaussian update (inverse-sigmoid mean update + covariance blend)
#   mean/delta/dir: (3, M), cov: (9, M), var_logit: (1, M)
#   -> new_mean (3, M), new_cov (9, M)
# -----------------------------------------------------------------------------
def _gaussian_update_kernel(mean_ref, delta_ref, cov_ref, dir_ref, vlog_ref,
                            nmean_ref, ncov_ref, *, pc_lo, pc_size):
    eps = 1e-5
    # --- mean update: normalize -> clamp -> inverse_sigmoid -> +delta -> sigmoid -> denorm
    mean_rows = []
    for ax in range(3):
        m = mean_ref[ax:ax + 1, :]
        d = delta_ref[ax:ax + 1, :]
        mn = (m - pc_lo[ax]) / pc_size[ax]
        mn = jnp.clip(mn, 0.0, 1.0)
        x1 = jnp.maximum(mn, eps)
        x2 = jnp.maximum(1.0 - mn, eps)
        logit = jnp.log(x1 / x2)
        s = jax.nn.sigmoid(logit + d)
        mean_rows.append(s * pc_size[ax] + pc_lo[ax])
    nmean_ref[...] = jnp.concatenate(mean_rows, axis=0)

    # --- covariance update: cov*w + v v^T (1 - w), v = normalize(cross(dir, e_z))
    w = jax.nn.sigmoid(vlog_ref[0:1, :])
    dx = dir_ref[0:1, :]
    dy = dir_ref[1:2, :]
    vx = dy                       # cross(d, (0,0,1)) = (dy, -dx, 0)
    vy = -dx
    nrm = jnp.sqrt(vx * vx + vy * vy)
    inv = 1.0 / jnp.maximum(nrm, 1e-12)
    vx = vx * inv
    vy = vy * inv
    zero = jnp.zeros_like(vx)
    vv = (vx * vx, vx * vy, zero,
          vy * vx, vy * vy, zero,
          zero, zero, zero)
    omw = 1.0 - w
    cov_rows = [cov_ref[k:k + 1, :] * w + vv[k] * omw for k in range(9)]
    ncov_ref[...] = jnp.concatenate(cov_rows, axis=0)


def gaussian_update(mean_cm, delta_cm, cov_cm, dir_cm, vlog_cm, pc_range, tile_m=512):
    _, M = mean_cm.shape
    tm = min(tile_m, _round_up(M, 128))
    Mp = _round_up(M, tm)
    pad = ((0, 0), (0, Mp - M))
    args = [jnp.pad(a.astype(jnp.float32), pad)
            for a in (mean_cm, delta_cm, cov_cm, dir_cm, vlog_cm)]
    pc_lo = tuple(float(pc_range[i]) for i in range(3))
    pc_size = tuple(float(pc_range[3 + i] - pc_range[i]) for i in range(3))

    nmean, ncov = pl.pallas_call(
        functools.partial(_gaussian_update_kernel, pc_lo=pc_lo, pc_size=pc_size),
        out_shape=(jax.ShapeDtypeStruct((3, Mp), jnp.float32),
                   jax.ShapeDtypeStruct((9, Mp), jnp.float32)),
        grid=(Mp // tm,),
        in_specs=[
            pl.BlockSpec((3, tm), lambda i: (0, i)),
            pl.BlockSpec((3, tm), lambda i: (0, i)),
            pl.BlockSpec((9, tm), lambda i: (0, i)),
            pl.BlockSpec((3, tm), lambda i: (0, i)),
            pl.BlockSpec((1, tm), lambda i: (0, i)),
        ],
        out_specs=(pl.BlockSpec((3, tm), lambda i: (0, i)),
                   pl.BlockSpec((9, tm), lambda i: (0, i))),
        compiler_params=pltpu.CompilerParams(dimension_semantics=("parallel",)),
    )(*args)
    return nmean[:, :M], ncov[:, :M]


# -----------------------------------------------------------------------------
# Plain-JAX glue: bilinear grid_sample (data-dependent gather) and camera projection
# -----------------------------------------------------------------------------
def grid_sample_bilinear(feat, grid):
    """F.grid_sample(mode='bilinear', padding_mode='zeros', align_corners=False).
    feat: (B, C, H, W), grid: (B, Hg, Wg, 2) in [-1, 1] -> (B, C, Hg, Wg)."""
    # TODO(synk): data-dependent gather has no clean Pallas TPU equivalent; kept in JAX.
    B, C, H, W = feat.shape
    Hg, Wg = grid.shape[1], grid.shape[2]
    gx = grid[..., 0]
    gy = grid[..., 1]
    ix = (gx + 1.0) * W / 2.0 - 0.5
    iy = (gy + 1.0) * H / 2.0 - 0.5
    ix0 = jnp.floor(ix)
    iy0 = jnp.floor(iy)
    ix1 = ix0 + 1.0
    iy1 = iy0 + 1.0
    wx1 = ix - ix0
    wx0 = 1.0 - wx1
    wy1 = iy - iy0
    wy0 = 1.0 - wy1

    flat = feat.reshape(B, C, H * W)

    def gather(ix_i, iy_i):
        valid = ((ix_i >= 0) & (ix_i <= W - 1) &
                 (iy_i >= 0) & (iy_i <= H - 1)).astype(feat.dtype)
        ixc = jnp.clip(ix_i, 0, W - 1).astype(jnp.int32)
        iyc = jnp.clip(iy_i, 0, H - 1).astype(jnp.int32)
        lin_idx = (iyc * W + ixc).reshape(B, 1, Hg * Wg)
        lin_idx = jnp.broadcast_to(lin_idx, (B, C, Hg * Wg))
        g = jnp.take_along_axis(flat, lin_idx, axis=2).reshape(B, C, Hg, Wg)
        return g, valid

    g00, v00 = gather(ix0, iy0)
    g01, v01 = gather(ix1, iy0)
    g10, v10 = gather(ix0, iy1)
    g11, v11 = gather(ix1, iy1)
    out = (g00 * (wx0 * wy0 * v00)[:, None]
           + g01 * (wx1 * wy0 * v01)[:, None]
           + g10 * (wx0 * wy1 * v10)[:, None]
           + g11 * (wx1 * wy1 * v11)[:, None])
    return out


# -----------------------------------------------------------------------------
# GaussianUpdateLayer forward
# -----------------------------------------------------------------------------
PC_RANGE = (-50.0, -50.0, -10.0, 50.0, 50.0, 10.0)


def gaussian_update_layer_forward(params, img_features, means3D, features, cov3D,
                                  direction_vector, lidar2img, noise):
    b, n, l, _ = means3D.shape
    BN, C, H, W = img_features.shape
    E = features.shape[-1]
    M = b * n * l
    num_points = noise.shape[0] // 3

    # ---- channel-major (rows, tokens) layouts for the lane-dense Pallas kernels
    mean_cm = means3D.reshape(M, 3).T          # (3, M)
    cov_cm = cov3D.reshape(M, 9).T             # (9, M) row-major 3x3

    # ---- sample num_points points from N(mean, cov) per gaussian (Kernel 2)
    samples_cm = mvn_sample(mean_cm, cov_cm, noise, num_points)        # (3P, M)
    sampling_points = samples_cm.T.reshape(b, n, l, num_points, 3)     # 'b n l p d'

    # ---- project to camera: lidar2img @ [x y z 1]^T, perspective divide
    ones = jnp.ones(sampling_points.shape[:-1] + (1,), jnp.float32)
    pts_h = jnp.concatenate([sampling_points, ones], axis=-1)          # (b,n,l,P,4)
    cam = jnp.einsum("bnij,bnlpj->bnlpi", lidar2img, pts_h)
    homo = jnp.maximum(cam[..., 2:3], 1e-6)
    cam_xy = cam[..., 0:2] / homo
    sampling_points_cam_out = cam_xy                                   # (b,n,l,P,2) pixels

    gx = cam_xy[..., 0] / 480.0 * 2.0 - 1.0
    gy = cam_xy[..., 1] / 224.0 * 2.0 - 1.0
    grid = jnp.stack([gx, gy], axis=-1).reshape(b * n, l, num_points, 2)

    # ---- bilinear grid_sample (zeros padding, align_corners=False), plain JAX gather
    sampled = grid_sample_bilinear(img_features, grid)                 # (b*n, C, l, P)
    # '(b n) d l p -> b n l (p d)'
    sampled = jnp.transpose(sampled, (0, 2, 3, 1)).reshape(b, n, l, num_points * C)

    # ---- aggregate MLP: Linear(E*P, E) -> ReLU -> Linear(E, E)  (fused bias+ReLU)
    agg = params["aggregate"]
    h = linear_wb(sampled, agg["fc1"]["w"], agg["fc1"]["b"], activation="relu")
    sampled_features = linear_wb(h, agg["fc2"]["w"], agg["fc2"]["b"])
    features = features + sampled_features

    # ---- update_mean / update_variance heads, fused into lane-dense GEMMs:
    #      fc1s concatenated (out = 2E), fc2s block-diagonal (out = 4, padded to 128)
    um, uv = params["update_mean"], params["update_variance"]
    w1_cat = jnp.concatenate([um["fc1"]["w"], uv["fc1"]["w"]], axis=0)       # (2E, E)
    b1_cat = jnp.concatenate([um["fc1"]["b"], uv["fc1"]["b"]], axis=0)
    h12 = linear_wb(sampled_features, w1_cat, b1_cat, activation="relu")     # (...,2E)

    w2_blk = jnp.zeros((4, 2 * E), jnp.float32)
    w2_blk = w2_blk.at[0:3, 0:E].set(um["fc2"]["w"])
    w2_blk = w2_blk.at[3:4, E:2 * E].set(uv["fc2"]["w"])
    b2_blk = jnp.concatenate([um["fc2"]["b"], uv["fc2"]["b"]], axis=0)
    heads = linear_wb(h12, w2_blk, b2_blk)                                   # (b,n,l,4)
    delta = heads[..., 0:3]
    var_logit = heads[..., 3:4]

    # ---- fused mean / covariance update (Kernel 3)
    delta_cm = delta.reshape(M, 3).T
    dir_cm = direction_vector.reshape(M, 3).T
    vlog_cm = var_logit.reshape(M, 1).T
    nmean_cm, ncov_cm = gaussian_update(mean_cm, delta_cm, cov_cm, dir_cm,
                                        vlog_cm, PC_RANGE)
    means3D_new = nmean_cm.T.reshape(b, n, l, 3)
    cov3D_new = ncov_cm.T.reshape(b, n, l, 3, 3)

    return features, means3D_new, cov3D_new, sampling_points_cam_out


# -----------------------------------------------------------------------------
# Parameters (torch Linear layout: w (out, in), b (out,))
# -----------------------------------------------------------------------------
def init_params(key, embed_dims, num_points):
    E = embed_dims
    keys = iter(jax.random.split(key, 16))

    def lin(cin, cout):
        return {"w": 0.05 * jax.random.normal(next(keys), (cout, cin), jnp.float32),
                "b": 0.01 * jax.random.normal(next(keys), (cout,), jnp.float32)}

    return {
        "aggregate": {"fc1": lin(E * num_points, E), "fc2": lin(E, E)},
        "update_mean": {"fc1": lin(E, E), "fc2": lin(E, 3)},
        "update_variance": {"fc1": lin(E, E), "fc2": lin(E, 1)},
    }


# -----------------------------------------------------------------------------
if __name__ == "__main__":
    key = jax.random.PRNGKey(0)
    (k_params, k_img, k_feat, k_mx, k_my, k_mz,
     k_cov, k_dirn, k_l2i, k_noise) = jax.random.split(key, 10)

    # small test config
    b, n, l = 2, 2, 8          # batch, cameras, gaussians
    E = 32                     # embed_dims
    P = 4                      # num_points
    H, W = 16, 32              # image-feature spatial size
    M = b * n * l

    params = init_params(k_params, E, P)

    img_features = 0.1 * jax.random.normal(k_img, (b * n, E, H, W), jnp.float32)
    features = 0.1 * jax.random.normal(k_feat, (b, n, l, E), jnp.float32)

    mx = jax.random.uniform(k_mx, (b, n, l, 1), minval=5.0, maxval=30.0)
    my = jax.random.uniform(k_my, (b, n, l, 1), minval=-10.0, maxval=10.0)
    mz = jax.random.uniform(k_mz, (b, n, l, 1), minval=-2.0, maxval=2.0)
    means3D = jnp.concatenate([mx, my, mz], axis=-1)

    A = 0.2 * jax.random.normal(k_cov, (b, n, l, 3, 3), jnp.float32)
    cov3D = A @ jnp.swapaxes(A, -1, -2) + 0.5 * jnp.eye(3, dtype=jnp.float32)

    direction_vector = means3D / jnp.linalg.norm(means3D, axis=-1, keepdims=True)

    fx = fy = 200.0
    cx, cy = 240.0, 112.0
    base = jnp.array([[cx, -fx, 0.0, 0.0],
                      [cy, 0.0, -fy, 0.0],
                      [1.0, 0.0, 0.0, 0.0],
                      [0.0, 0.0, 0.0, 1.0]], jnp.float32)
    lidar2img = (jnp.broadcast_to(base, (b, n, 4, 4))
                 + 0.01 * jax.random.normal(k_l2i, (b, n, 4, 4), jnp.float32))

    noise = jax.random.normal(k_noise, (3 * P, M), jnp.float32)

    fwd = jax.jit(gaussian_update_layer_forward)
    outs = fwd(params, img_features, means3D, features, cov3D,
               direction_vector, lidar2img, noise)
    outs = jax.block_until_ready(outs)

    new_features, new_means3D, new_cov3D, sampling_points_cam = outs
    assert new_features.shape == (b, n, l, E)
    assert new_means3D.shape == (b, n, l, 3)
    assert new_cov3D.shape == (b, n, l, 3, 3)
    assert sampling_points_cam.shape == (b, n, l, P, 2)
    assert all(bool(jnp.all(jnp.isfinite(o))) for o in outs)
    # means must land back inside pc_range after the sigmoid-space update
    assert bool(jnp.all(new_means3D[..., 0] >= PC_RANGE[0] - 1e-3))
    assert bool(jnp.all(new_means3D[..., 0] <= PC_RANGE[3] + 1e-3))
    print("KERNEL_OK")
</pallas_src>

<mosaic_0001>
module attributes {stable_mosaic.version = 11 : i64} {
  func.func @_mvn_sample_kernel(%arg0: i32, %arg1: memref<3x128xf32, #tpu.memory_space<vmem>>, %arg2: memref<9x128xf32, #tpu.memory_space<vmem>>, %arg3: memref<12x128xf32, #tpu.memory_space<vmem>>, %arg4: memref<12x128xf32, #tpu.memory_space<vmem>>) attributes {dimension_semantics = [#tpu.dimension_semantics<parallel>], iteration_bounds = array<i64: 1>, scalar_prefetch = 0 : i64, scratch_operands = 0 : i64, tpu.core_type = #tpu.core_type<tc>, window_params = [{transform_indices = @transform_0, window_bounds = array<i64: 3, 128>}, {transform_indices = @transform_1, window_bounds = array<i64: 9, 128>}, {transform_indices = @transform_2, window_bounds = array<i64: 12, 128>}, {transform_indices = @transform_3, window_bounds = array<i64: 12, 128>}]} {
    %c0 = arith.constant 0 : index
    %c0_0 = arith.constant 0 : index
    %0 = vector.load %arg2[%c0, %c0_0] : memref<9x128xf32, #tpu.memory_space<vmem>>, vector<1x128xf32>
    %c3 = arith.constant 3 : index
    %c0_1 = arith.constant 0 : index
    %1 = vector.load %arg2[%c3, %c0_1] : memref<9x128xf32, #tpu.memory_space<vmem>>, vector<1x128xf32>
    %c4 = arith.constant 4 : index
    %c0_2 = arith.constant 0 : index
    %2 = vector.load %arg2[%c4, %c0_2] : memref<9x128xf32, #tpu.memory_space<vmem>>, vector<1x128xf32>
    %c6 = arith.constant 6 : index
    %c0_3 = arith.constant 0 : index
    %3 = vector.load %arg2[%c6, %c0_3] : memref<9x128xf32, #tpu.memory_space<vmem>>, vector<1x128xf32>
    %c7 = arith.constant 7 : index
    %c0_4 = arith.constant 0 : index
    %4 = vector.load %arg2[%c7, %c0_4] : memref<9x128xf32, #tpu.memory_space<vmem>>, vector<1x128xf32>
    %c8 = arith.constant 8 : index
    %c0_5 = arith.constant 0 : index
    %5 = vector.load %arg2[%c8, %c0_5] : memref<9x128xf32, #tpu.memory_space<vmem>>, vector<1x128xf32>
    %cst = arith.constant 9.99999971E-10 : f32
    %6 = vector.broadcast %cst : f32 to vector<1x128xf32>
    %7 = arith.maximumf %0, %6 : vector<1x128xf32>
    %8 = math.sqrt %7 : vector<1x128xf32>
    %cst_6 = arith.constant 1.000000e+00 : f32
    %9 = vector.broadcast %cst_6 : f32 to vector<1x128xf32>
    %10 = arith.divf %9, %8 : vector<1x128xf32>
    %11 = arith.mulf %1, %10 : vector<1x128xf32>
    %12 = arith.mulf %3, %10 : vector<1x128xf32>
    %13 = arith.mulf %11, %11 : vector<1x128xf32>
    %14 = arith.subf %2, %13 : vector<1x128xf32>
    %cst_7 = arith.constant 9.99999971E-10 : f32
    %15 = vector.broadcast %cst_7 : f32 to vector<1x128xf32>
    %16 = arith.maximumf %14, %15 : vector<1x128xf32>
    %17 = math.sqrt %16 : vector<1x128xf32>
    %cst_8 = arith.constant 1.000000e+00 : f32
    %18 = vector.broadcast %cst_8 : f32 to vector<1x128xf32>
    %19 = arith.divf %18, %17 : vector<1x128xf32>
    %20 = arith.mulf %12, %11 : vector<1x128xf32>
    %21 = arith.subf %4, %20 : vector<1x128xf32>
    %22 = arith.mulf %21, %19 : vector<1x128xf32>
    %23 = arith.mulf %12, %12 : vector<1x128xf32>
    %24 = arith.subf %5, %23 : vector<1x128xf32>
    %25 = arith.mulf %22, %22 : vector<1x128xf32>
    %26 = arith.subf %24, %25 : vector<1x128xf32>
    %cst_9 = arith.constant 9.99999971E-10 : f32
    %27 = vector.broadcast %cst_9 : f32 to vector<1x128xf32>
    %28 = arith.maximumf %26, %27 : vector<1x128xf32>
    %29 = math.sqrt %28 : vector<1x128xf32>
    %c0_10 = arith.constant 0 : index
    %c0_11 = arith.constant 0 : index
    %30 = vector.load %arg1[%c0_10, %c0_11] : memref<3x128xf32, #tpu.memory_space<vmem>>, vector<1x128xf32>
    %c1 = arith.constant 1 : index
    %c0_12 = arith.constant 0 : index
    %31 = vector.load %arg1[%c1, %c0_12] : memref<3x128xf32, #tpu.memory_space<vmem>>, vector<1x128xf32>
    %c2 = arith.constant 2 : index
    %c0_13 = arith.constant 0 : index
    %32 = vector.load %arg1[%c2, %c0_13] : memref<3x128xf32, #tpu.memory_space<vmem>>, vector<1x128xf32>
    %c0_14 = arith.constant 0 : index
    %c0_15 = arith.constant 0 : index
    %33 = vector.load %arg3[%c0_14, %c0_15] : memref<12x128xf32, #tpu.memory_space<vmem>>, vector<1x128xf32>
    %c1_16 = arith.constant 1 : index
    %c0_17 = arith.constant 0 : index
    %34 = vector.load %arg3[%c1_16, %c0_17] : memref<12x128xf32, #tpu.memory_space<vmem>>, vector<1x128xf32>
    %c2_18 = arith.constant 2 : index
    %c0_19 = arith.constant 0 : index
    %35 = vector.load %arg3[%c2_18, %c0_19] : memref<12x128xf32, #tpu.memory_space<vmem>>, vector<1x128xf32>
    %36 = arith.mulf %8, %33 : vector<1x128xf32>
    %37 = arith.addf %30, %36 : vector<1x128xf32>
    %38 = arith.mulf %11, %33 : vector<1x128xf32>
    %39 = arith.addf %31, %38 : vector<1x128xf32>
    %40 = arith.mulf %17, %34 : vector<1x128xf32>
    %41 = arith.addf %39, %40 : vector<1x128xf32>
    %42 = arith.mulf %12, %33 : vector<1x128xf32>
    %43 = arith.addf %32, %42 : vector<1x128xf32>
    %44 = arith.mulf %22, %34 : vector<1x128xf32>
    %45 = arith.addf %43, %44 : vector<1x128xf32>
    %46 = arith.mulf %29, %35 : vector<1x128xf32>
    %47 = arith.addf %45, %46 : vector<1x128xf32>
    %c3_20 = arith.constant 3 : index
    %c0_21 = arith.constant 0 : index
    %48 = vector.load %arg3[%c3_20, %c0_21] : memref<12x128xf32, #tpu.memory_space<vmem>>, vector<1x128xf32>
    %c4_22 = arith.constant 4 : index
    %c0_23 = arith.constant 0 : index
    %49 = vector.load %arg3[%c4_22, %c0_23] : memref<12x128xf32, #tpu.memory_space<vmem>>, vector<1x128xf32>
    %c5 = arith.constant 5 : index
    %c0_24 = arith.constant 0 : index
    %50 = vector.load %arg3[%c5, %c0_24] : memref<12x128xf32, #tpu.memory_space<vmem>>, vector<1x128xf32>
    %51 = arith.mulf %8, %48 : vector<1x128xf32>
    %52 = arith.addf %30, %51 : vector<1x128xf32>
    %53 = arith.mulf %11, %48 : vector<1x128xf32>
    %54 = arith.addf %31, %53 : vector<1x128xf32>
    %55 = arith.mulf %17, %49 : vector<1x128xf32>
    %56 = arith.addf %54, %55 : vector<1x128xf32>
    %57 = arith.mulf %12, %48 : vector<1x128xf32>
    %58 = arith.addf %32, %57 : vector<1x128xf32>
    %59 = arith.mulf %22, %49 : vector<1x128xf32>
    %60 = arith.addf %58, %59 : vector<1x128xf32>
    %61 = arith.mulf %29, %50 : vector<1x128xf32>
    %62 = arith.addf %60, %61 : vector<1x128xf32>
    %c6_25 = arith.constant 6 : index
    %c0_26 = arith.constant 0 : index
    %63 = vector.load %arg3[%c6_25, %c0_26] : memref<12x128xf32, #tpu.memory_space<vmem>>, vector<1x128xf32>
    %c7_27 = arith.constant 7 : index
    %c0_28 = arith.constant 0 : index
    %64 = vector.load %arg3[%c7_27, %c0_28] : memref<12x128xf32, #tpu.memory_space<vmem>>, vector<1x128xf32>
    %c8_29 = arith.constant 8 : index
    %c0_30 = arith.constant 0 : index
    %65 = vector.load %arg3[%c8_29, %c0_30] : memref<12x128xf32, #tpu.memory_space<vmem>>, vector<1x128xf32>
    %66 = arith.mulf %8, %63 : vector<1x128xf32>
    %67 = arith.addf %30, %66 : vector<1x128xf32>
    %68 = arith.mulf %11, %63 : vector<1x128xf32>
    %69 = arith.addf %31, %68 : vector<1x128xf32>
    %70 = arith.mulf %17, %64 : vector<1x128xf32>
    %71 = arith.addf %69, %70 : vector<1x128xf32>
    %72 = arith.mulf %12, %63 : vector<1x128xf32>
    %73 = arith.addf %32, %72 : vector<1x128xf32>
    %74 = arith.mulf %22, %64 : vector<1x128xf32>
    %75 = arith.addf %73, %74 : vector<1x128xf32>
    %76 = arith.mulf %29, %65 : vector<1x128xf32>
    %77 = arith.addf %75, %76 : vector<1x128xf32>
    %c9 = arith.constant 9 : index
    %c0_31 = arith.constant 0 : index
    %78 = vector.load %arg3[%c9, %c0_31] : memref<12x128xf32, #tpu.memory_space<vmem>>, vector<1x128xf32>
    %c10 = arith.constant 10 : index
    %c0_32 = arith.constant 0 : index
    %79 = vector.load %arg3[%c10, %c0_32] : memref<12x128xf32, #tpu.memory_space<vmem>>, vector<1x128xf32>
    %c11 = arith.constant 11 : index
    %c0_33 = arith.constant 0 : index
    %80 = vector.load %arg3[%c11, %c0_33] : memref<12x128xf32, #tpu.memory_space<vmem>>, vector<1x128xf32>
    %81 = arith.mulf %8, %78 : vector<1x128xf32>
    %82 = arith.addf %30, %81 : vector<1x128xf32>
    %83 = arith.mulf %11, %78 : vector<1x128xf32>
    %84 = arith.addf %31, %83 : vector<1x128xf32>
    %85 = arith.mulf %17, %79 : vector<1x128xf32>
    %86 = arith.addf %84, %85 : vector<1x128xf32>
    %87 = arith.mulf %12, %78 : vector<1x128xf32>
    %88 = arith.addf %32, %87 : vector<1x128xf32>
    %89 = arith.mulf %22, %79 : vector<1x128xf32>
    %90 = arith.addf %88, %89 : vector<1x128xf32>
    %91 = arith.mulf %29, %80 : vector<1x128xf32>
    %92 = arith.addf %90, %91 : vector<1x128xf32>
    %93 = tpu.concatenate %37, %41, %47, %52, %56, %62, %67, %71, %77, %82, %86, %92 in 0 : vector<1x128xf32>, vector<1x128xf32>, vector<1x128xf32>, vector<1x128xf32>, vector<1x128xf32>, vector<1x128xf32>, vector<1x128xf32>, vector<1x128xf32>, vector<1x128xf32>, vector<1x128xf32>, vector<1x128xf32>, vector<1x128xf32> -> vector<12x128xf32>
    %c0_34 = arith.constant 0 : index
    %c0_35 = arith.constant 0 : index
    %94 = vector.load %arg4[%c0_34, %c0_35] : memref<12x128xf32, #tpu.memory_space<vmem>>, vector<12x128xf32>
    tpu.vector_store %arg4[%c0_34, %c0_35], %93 {strides = array<i32>} : memref<12x128xf32, #tpu.memory_space<vmem>>, vector<12x128xf32>,
    return
  }
  func.func @transform_0(%arg0: i32) -> (i32, i32) {
    %c0_i32 = arith.constant 0 : i32
    %c0_i32_0 = arith.constant 0 : i32
    return %c0_i32, %arg0 : i32, i32
  }
  func.func @transform_1(%arg0: i32) -> (i32, i32) {
    %c0_i32 = arith.constant 0 : i32
    %c0_i32_0 = arith.constant 0 : i32
    return %c0_i32, %arg0 : i32, i32
  }
  func.func @transform_2(%arg0: i32) -> (i32, i32) {
    %c0_i32 = arith.constant 0 : i32
    %c0_i32_0 = arith.constant 0 : i32
    return %c0_i32, %arg0 : i32, i32
  }
  func.func @transform_3(%arg0: i32) -> (i32, i32) {
    %c0_i32 = arith.constant 0 : i32
    %c0_i32_0 = arith.constant 0 : i32
    return %c0_i32, %arg0 : i32, i32
  }
}

module attributes {stable_mosaic.version = 11 : i64} {
  func.func @_matmul_bias_act_kernel(%arg0: i32, %arg1: i32, %arg2: i32, %arg3: memref<32x128xbf16, #tpu.memory_space<vmem>>, %arg4: memref<128x128xbf16, #tpu.memory_space<vmem>>, %arg5: memref<1x128xf32, #tpu.memory_space<vmem>>, %arg6: memref<32x128xf32, #tpu.memory_space<vmem>>, %arg7: memref<32x128xf32, #tpu.memory_space<vmem>>) attributes {dimension_semantics = [#tpu.dimension_semantics<parallel>, #tpu.dimension_semantics<parallel>, #tpu.dimension_semantics<arbitrary>], iteration_bounds = array<i64: 1, 1, 1>, scalar_prefetch = 0 : i64, scratch_operands = 1 : i64, tpu.core_type = #tpu.core_type<tc>, window_params = [{transform_indices = @transform_0, window_bounds = array<i64: 32, 128>}, {transform_indices = @transform_1, window_bounds = array<i64: 128, 128>}, {transform_indices = @transform_2, window_bounds = array<i64: 1, 128>}, {transform_indices = @transform_3, window_bounds = array<i64: 32, 128>}]} {
    %c0_i32 = arith.constant 0 : i32
    %0 = arith.cmpi eq, %arg2, %c0_i32 : i32
    %1 = arith.extui %0 : i1 to i32
    %c0_i32_0 = arith.constant 0 : i32
    %2 = arith.cmpi ne, %1, %c0_i32_0 : i32
    scf.if %2 {
      %cst_10 = arith.constant 0.000000e+00 : f32
      %12 = vector.broadcast %cst_10 : f32 to vector<32x128xf32>
      %c0_11 = arith.constant 0 : index
      %c0_12 = arith.constant 0 : index
      %13 = vector.load %arg7[%c0_11, %c0_12] : memref<32x128xf32, #tpu.memory_space<vmem>>, vector<32x128xf32>
      tpu.vector_store %arg7[%c0_11, %c0_12], %12 {strides = array<i32>} : memref<32x128xf32, #tpu.memory_space<vmem>>, vector<32x128xf32>,
    } else {
    }
    %c0 = arith.constant 0 : index
    %c0_1 = arith.constant 0 : index
    %3 = vector.load %arg7[%c0, %c0_1] : memref<32x128xf32, #tpu.memory_space<vmem>>, vector<32x128xf32>
    %c0_2 = arith.constant 0 : index
    %c0_3 = arith.constant 0 : index
    %4 = vector.load %arg3[%c0_2, %c0_3] : memref<32x128xbf16, #tpu.memory_space<vmem>>, vector<32x128xbf16>
    %c0_4 = arith.constant 0 : index
    %c0_5 = arith.constant 0 : index
    %5 = vector.load %arg4[%c0_4, %c0_5] : memref<128x128xbf16, #tpu.memory_space<vmem>>, vector<128x128xbf16>
    %cst = arith.constant dense<0.000000e+00> : vector<32x128xf32>
    %6 = tpu.matmul %4, %5, %cst {dimension_numbers = #tpu.dot_dimension_numbers<[1], [0], [0], [1], [0, 0, 1, 1], [], []>} : vector<32x128xbf16>, vector<128x128xbf16>, vector<32x128xf32> -> vector<32x128xf32>
    %7 = arith.addf %3, %6 : vector<32x128xf32>
    %c0_6 = arith.constant 0 : index
    %c0_7 = arith.constant 0 : index
    %8 = vector.load %arg7[%c0_6, %c0_7] : memref<32x128xf32, #tpu.memory_space<vmem>>, vector<32x128xf32>
    tpu.vector_store %arg7[%c0_6, %c0_7], %7 {strides = array<i32>} : memref<32x128xf32, #tpu.memory_space<vmem>>, vector<32x128xf32>,
    %c0_i32_8 = arith.constant 0 : i32
    %9 = arith.cmpi eq, %arg2, %c0_i32_8 : i32
    %10 = arith.extui %9 : i1 to i32
    %c0_i32_9 = arith.constant 0 : i32
    %11 = arith.cmpi ne, %10, %c0_i32_9 : i32
    scf.if %11 {
      %c0_10 = arith.constant 0 : index
      %c0_11 = arith.constant 0 : index
      %12 = vector.load %arg7[%c0_10, %c0_11] : memref<32x128xf32, #tpu.memory_space<vmem>>, vector<32x128xf32>
      %c0_12 = arith.constant 0 : index
      %c0_13 = arith.constant 0 : index
      %13 = vector.load %arg5[%c0_12, %c0_13] : memref<1x128xf32, #tpu.memory_space<vmem>>, vector<1x128xf32>
      %14 = vector.broadcast %13 : vector<1x128xf32> to vector<32x128xf32>
      %15 = arith.addf %12, %14 : vector<32x128xf32>
      %cst_14 = arith.constant 0.000000e+00 : f32
      %16 = vector.broadcast %cst_14 : f32 to vector<32x128xf32>
      %17 = arith.maximumf %15, %16 : vector<32x128xf32>
      %c0_15 = arith.constant 0 : index
      %c0_16 = arith.constant 0 : index
      %18 = vector.load %arg6[%c0_15, %c0_16] : memref<32x128xf32, #tpu.memory_space<vmem>>, vector<32x128xf32>
      tpu.vector_store %arg6[%c0_15, %c0_16], %17 {strides = array<i32>} : memref<32x128xf32, #tpu.memory_space<vmem>>, vector<32x128xf32>,
    } else {
    }
    return
  }
  func.func @transform_0(%arg0: i32, %arg1: i32, %arg2: i32) -> (i32, i32) {
    %c0_i32 = arith.constant 0 : i32
    return %arg0, %arg2 : i32, i32
  }
  func.func @transform_1(%arg0: i32, %arg1: i32, %arg2: i32) -> (i32, i32) {
    %c0_i32 = arith.constant 0 : i32
    return %arg2, %arg1 : i32, i32
  }
  func.func @transform_2(%arg0: i32, %arg1: i32, %arg2: i32) -> (i32, i32) {
    %c0_i32 = arith.constant 0 : i32
    %c0_i32_0 = arith.constant 0 : i32
    return %c0_i32, %arg1 : i32, i32
  }
  func.func @transform_3(%arg0: i32, %arg1: i32, %arg2: i32) -> (i32, i32) {
    %c0_i32 = arith.constant 0 : i32
    return %arg0, %arg1 : i32, i32
  }
}

module attributes {stable_mosaic.version = 11 : i64} {
  func.func @_matmul_bias_act_kernel(%arg0: i32, %arg1: i32, %arg2: i32, %arg3: memref<32x128xbf16, #tpu.memory_space<vmem>>, %arg4: memref<128x128xbf16, #tpu.memory_space<vmem>>, %arg5: memref<1x128xf32, #tpu.memory_space<vmem>>, %arg6: memref<32x128xf32, #tpu.memory_space<vmem>>, %arg7: memref<32x128xf32, #tpu.memory_space<vmem>>) attributes {dimension_semantics = [#tpu.dimension_semantics<parallel>, #tpu.dimension_semantics<parallel>, #tpu.dimension_semantics<arbitrary>], iteration_bounds = array<i64: 1, 1, 1>, scalar_prefetch = 0 : i64, scratch_operands = 1 : i64, tpu.core_type = #tpu.core_type<tc>, window_params = [{transform_indices = @transform_0, window_bounds = array<i64: 32, 128>}, {transform_indices = @transform_1, window_bounds = array<i64: 128, 128>}, {transform_indices = @transform_2, window_bounds = array<i64: 1, 128>}, {transform_indices = @transform_3, window_bounds = array<i64: 32, 128>}]} {
    %c0_i32 = arith.constant 0 : i32
    %0 = arith.cmpi eq, %arg2, %c0_i32 : i32
    %1 = arith.extui %0 : i1 to i32
    %c0_i32_0 = arith.constant 0 : i32
    %2 = arith.cmpi ne, %1, %c0_i32_0 : i32
    scf.if %2 {
      %cst_10 = arith.constant 0.000000e+00 : f32
      %12 = vector.broadcast %cst_10 : f32 to vector<32x128xf32>
      %c0_11 = arith.constant 0 : index
      %c0_12 = arith.constant 0 : index
      %13 = vector.load %arg7[%c0_11, %c0_12] : memref<32x128xf32, #tpu.memory_space<vmem>>, vector<32x128xf32>
      tpu.vector_store %arg7[%c0_11, %c0_12], %12 {strides = array<i32>} : memref<32x128xf32, #tpu.memory_space<vmem>>, vector<32x128xf32>,
    } else {
    }
    %c0 = arith.constant 0 : index
    %c0_1 = arith.constant 0 : index
    %3 = vector.load %arg7[%c0, %c0_1] : memref<32x128xf32, #tpu.memory_space<vmem>>, vector<32x128xf32>
    %c0_2 = arith.constant 0 : index
    %c0_3 = arith.constant 0 : index
    %4 = vector.load %arg3[%c0_2, %c0_3] : memref<32x128xbf16, #tpu.memory_space<vmem>>, vector<32x128xbf16>
    %c0_4 = arith.constant 0 : index
    %c0_5 = arith.constant 0 : index
    %5 = vector.load %arg4[%c0_4, %c0_5] : memref<128x128xbf16, #tpu.memory_space<vmem>>, vector<128x128xbf16>
    %cst = arith.constant dense<0.000000e+00> : vector<32x128xf32>
    %6 = tpu.matmul %4, %5, %cst {dimension_numbers = #tpu.dot_dimension_numbers<[1], [0], [0], [1], [0, 0, 1, 1], [], []>} : vector<32x128xbf16>, vector<128x128xbf16>, vector<32x128xf32> -> vector<32x128xf32>
    %7 = arith.addf %3, %6 : vector<32x128xf32>
    %c0_6 = arith.constant 0 : index
    %c0_7 = arith.constant 0 : index
    %8 = vector.load %arg7[%c0_6, %c0_7] : memref<32x128xf32, #tpu.memory_space<vmem>>, vector<32x128xf32>
    tpu.vector_store %arg7[%c0_6, %c0_7], %7 {strides = array<i32>} : memref<32x128xf32, #tpu.memory_space<vmem>>, vector<32x128xf32>,
    %c0_i32_8 = arith.constant 0 : i32
    %9 = arith.cmpi eq, %arg2, %c0_i32_8 : i32
    %10 = arith.extui %9 : i1 to i32
    %c0_i32_9 = arith.constant 0 : i32
    %11 = arith.cmpi ne, %10, %c0_i32_9 : i32
    scf.if %11 {
      %c0_10 = arith.constant 0 : index
      %c0_11 = arith.constant 0 : index
      %12 = vector.load %arg7[%c0_10, %c0_11] : memref<32x128xf32, #tpu.memory_space<vmem>>, vector<32x128xf32>
      %c0_12 = arith.constant 0 : index
      %c0_13 = arith.constant 0 : index
      %13 = vector.load %arg5[%c0_12, %c0_13] : memref<1x128xf32, #tpu.memory_space<vmem>>, vector<1x128xf32>
      %14 = vector.broadcast %13 : vector<1x128xf32> to vector<32x128xf32>
      %15 = arith.addf %12, %14 : vector<32x128xf32>
      %c0_14 = arith.constant 0 : index
      %c0_15 = arith.constant 0 : index
      %16 = vector.load %arg6[%c0_14, %c0_15] : memref<32x128xf32, #tpu.memory_space<vmem>>, vector<32x128xf32>
      tpu.vector_store %arg6[%c0_14, %c0_15], %15 {strides = array<i32>} : memref<32x128xf32, #tpu.memory_space<vmem>>, vector<32x128xf32>,
    } else {
    }
    return
  }
  func.func @transform_0(%arg0: i32, %arg1: i32, %arg2: i32) -> (i32, i32) {
    %c0_i32 = arith.constant 0 : i32
    return %arg0, %arg2 : i32, i32
  }
  func.func @transform_1(%arg0: i32, %arg1: i32, %arg2: i32) -> (i32, i32) {
    %c0_i32 = arith.constant 0 : i32
    return %arg2, %arg1 : i32, i32
  }
  func.func @transform_2(%arg0: i32, %arg1: i32, %arg2: i32) -> (i32, i32) {
    %c0_i32 = arith.constant 0 : i32
    %c0_i32_0 = arith.constant 0 : i32
    return %c0_i32, %arg1 : i32, i32
  }
  func.func @transform_3(%arg0: i32, %arg1: i32, %arg2: i32) -> (i32, i32) {
    %c0_i32 = arith.constant 0 : i32
    return %arg0, %arg1 : i32, i32
  }
}

module attributes {stable_mosaic.version = 11 : i64} {
  func.func @_gaussian_update_kernel(%arg0: i32, %arg1: memref<3x128xf32, #tpu.memory_space<vmem>>, %arg2: memref<3x128xf32, #tpu.memory_space<vmem>>, %arg3: memref<9x128xf32, #tpu.memory_space<vmem>>, %arg4: memref<3x128xf32, #tpu.memory_space<vmem>>, %arg5: memref<1x128xf32, #tpu.memory_space<vmem>>, %arg6: memref<3x128xf32, #tpu.memory_space<vmem>>, %arg7: memref<9x128xf32, #tpu.memory_space<vmem>>) attributes {dimension_semantics = [#tpu.dimension_semantics<parallel>], iteration_bounds = array<i64: 1>, scalar_prefetch = 0 : i64, scratch_operands = 0 : i64, tpu.core_type = #tpu.core_type<tc>, window_params = [{transform_indices = @transform_0, window_bounds = array<i64: 3, 128>}, {transform_indices = @transform_1, window_bounds = array<i64: 3, 128>}, {transform_indices = @transform_2, window_bounds = array<i64: 9, 128>}, {transform_indices = @transform_3, window_bounds = array<i64: 3, 128>}, {transform_indices = @transform_4, window_bounds = array<i64: 1, 128>}, {transform_indices = @transform_5, window_bounds = array<i64: 3, 128>}, {transform_indices = @transform_6, window_bounds = array<i64: 9, 128>}]} {
    %c0 = arith.constant 0 : index
    %c0_0 = arith.constant 0 : index
    %0 = vector.load %arg1[%c0, %c0_0] : memref<3x128xf32, #tpu.memory_space<vmem>>, vector<1x128xf32>
    %c0_1 = arith.constant 0 : index
    %c0_2 = arith.constant 0 : index
    %1 = vector.load %arg2[%c0_1, %c0_2] : memref<3x128xf32, #tpu.memory_space<vmem>>, vector<1x128xf32>
    %cst = arith.constant -5.000000e+01 : f32
    %2 = vector.broadcast %cst : f32 to vector<1x128xf32>
    %3 = arith.subf %0, %2 : vector<1x128xf32>
    %cst_3 = arith.constant 1.000000e+02 : f32
    %4 = vector.broadcast %cst_3 : f32 to vector<1x128xf32>
    %5 = arith.divf %3, %4 : vector<1x128xf32>
    %cst_4 = arith.constant 0.000000e+00 : f32
    %cst_5 = arith.constant 1.000000e+00 : f32
    %6 = vector.broadcast %cst_4 : f32 to vector<1x128xf32>
    %7 = arith.maximumf %6, %5 : vector<1x128xf32>
    %8 = vector.broadcast %cst_5 : f32 to vector<1x128xf32>
    %9 = arith.minimumf %8, %7 : vector<1x128xf32>
    %cst_6 = arith.constant 9.99999974E-6 : f32
    %10 = vector.broadcast %cst_6 : f32 to vector<1x128xf32>
    %11 = arith.maximumf %9, %10 : vector<1x128xf32>
    %cst_7 = arith.constant 1.000000e+00 : f32
    %12 = vector.broadcast %cst_7 : f32 to vector<1x128xf32>
    %13 = arith.subf %12, %9 : vector<1x128xf32>
    %cst_8 = arith.constant 9.99999974E-6 : f32
    %14 = vector.broadcast %cst_8 : f32 to vector<1x128xf32>
    %15 = arith.maximumf %13, %14 : vector<1x128xf32>
    %16 = arith.divf %11, %15 : vector<1x128xf32>
    %17 = math.log %16 : vector<1x128xf32>
    %18 = arith.addf %17, %1 : vector<1x128xf32>
    %19 = arith.negf %18 : vector<1x128xf32>
    %20 = math.exp %19 : vector<1x128xf32>
    %cst_9 = arith.constant 1.000000e+00 : f32
    %21 = vector.broadcast %cst_9 : f32 to vector<1x128xf32>
    %22 = arith.addf %21, %20 : vector<1x128xf32>
    %23 = arith.divf %21, %22 : vector<1x128xf32>
    %cst_10 = arith.constant 1.000000e+02 : f32
    %24 = vector.broadcast %cst_10 : f32 to vector<1x128xf32>
    %25 = arith.mulf %23, %24 : vector<1x128xf32>
    %cst_11 = arith.constant -5.000000e+01 : f32
    %26 = vector.broadcast %cst_11 : f32 to vector<1x128xf32>
    %27 = arith.addf %25, %26 : vector<1x128xf32>
    %c1 = arith.constant 1 : index
    %c0_12 = arith.constant 0 : index
    %28 = vector.load %arg1[%c1, %c0_12] : memref<3x128xf32, #tpu.memory_space<vmem>>, vector<1x128xf32>
    %c1_13 = arith.constant 1 : index
    %c0_14 = arith.constant 0 : index
    %29 = vector.load %arg2[%c1_13, %c0_14] : memref<3x128xf32, #tpu.memory_space<vmem>>, vector<1x128xf32>
    %cst_15 = arith.constant -5.000000e+01 : f32
    %30 = vector.broadcast %cst_15 : f32 to vector<1x128xf32>
    %31 = arith.subf %28, %30 : vector<1x128xf32>
    %cst_16 = arith.constant 1.000000e+02 : f32
    %32 = vector.broadcast %cst_16 : f32 to vector<1x128xf32>
    %33 = arith.divf %31, %32 : vector<1x128xf32>
    %cst_17 = arith.constant 0.000000e+00 : f32
    %cst_18 = arith.constant 1.000000e+00 : f32
    %34 = vector.broadcast %cst_17 : f32 to vector<1x128xf32>
    %35 = arith.maximumf %34, %33 : vector<1x128xf32>
    %36 = vector.broadcast %cst_18 : f32 to vector<1x128xf32>
    %37 = arith.minimumf %36, %35 : vector<1x128xf32>
    %cst_19 = arith.constant 9.99999974E-6 : f32
    %38 = vector.broadcast %cst_19 : f32 to vector<1x128xf32>
    %39 = arith.maximumf %37, %38 : vector<1x128xf32>
    %cst_20 = arith.constant 1.000000e+00 : f32
    %40 = vector.broadcast %cst_20 : f32 to vector<1x128xf32>
    %41 = arith.subf %40, %37 : vector<1x128xf32>
    %cst_21 = arith.constant 9.99999974E-6 : f32
    %42 = vector.broadcast %cst_21 : f32 to vector<1x128xf32>
    %43 = arith.maximumf %41, %42 : vector<1x128xf32>
    %44 = arith.divf %39, %43 : vector<1x128xf32>
    %45 = math.log %44 : vector<1x128xf32>
    %46 = arith.addf %45, %29 : vector<1x128xf32>
    %47 = arith.negf %46 : vector<1x128xf32>
    %48 = math.exp %47 : vector<1x128xf32>
    %cst_22 = arith.constant 1.000000e+00 : f32
    %49 = vector.broadcast %cst_22 : f32 to vector<1x128xf32>
    %50 = arith.addf %49, %48 : vector<1x128xf32>
    %51 = arith.divf %49, %50 : vector<1x128xf32>
    %cst_23 = arith.constant 1.000000e+02 : f32
    %52 = vector.broadcast %cst_23 : f32 to vector<1x128xf32>
    %53 = arith.mulf %51, %52 : vector<1x128xf32>
    %cst_24 = arith.constant -5.000000e+01 : f32
    %54 = vector.broadcast %cst_24 : f32 to vector<1x128xf32>
    %55 = arith.addf %53, %54 : vector<1x128xf32>
    %c2 = arith.constant 2 : index
    %c0_25 = arith.constant 0 : index
    %56 = vector.load %arg1[%c2, %c0_25] : memref<3x128xf32, #tpu.memory_space<vmem>>, vector<1x128xf32>
    %c2_26 = arith.constant 2 : index
    %c0_27 = arith.constant 0 : index
    %57 = vector.load %arg2[%c2_26, %c0_27] : memref<3x128xf32, #tpu.memory_space<vmem>>, vector<1x128xf32>
    %cst_28 = arith.constant -1.000000e+01 : f32
    %58 = vector.broadcast %cst_28 : f32 to vector<1x128xf32>
    %59 = arith.subf %56, %58 : vector<1x128xf32>
    %cst_29 = arith.constant 2.000000e+01 : f32
    %60 = vector.broadcast %cst_29 : f32 to vector<1x128xf32>
    %61 = arith.divf %59, %60 : vector<1x128xf32>
    %cst_30 = arith.constant 0.000000e+00 : f32
    %cst_31 = arith.constant 1.000000e+00 : f32
    %62 = vector.broadcast %cst_30 : f32 to vector<1x128xf32>
    %63 = arith.maximumf %62, %61 : vector<1x128xf32>
    %64 = vector.broadcast %cst_31 : f32 to vector<1x128xf32>
    %65 = arith.minimumf %64, %63 : vector<1x128xf32>
    %cst_32 = arith.constant 9.99999974E-6 : f32
    %66 = vector.broadcast %cst_32 : f32 to vector<1x128xf32>
    %67 = arith.maximumf %65, %66 : vector<1x128xf32>
    %cst_33 = arith.constant 1.000000e+00 : f32
    %68 = vector.broadcast %cst_33 : f32 to vector<1x128xf32>
    %69 = arith.subf %68, %65 : vector<1x128xf32>
    %cst_34 = arith.constant 9.99999974E-6 : f32
    %70 = vector.broadcast %cst_34 : f32 to vector<1x128xf32>
    %71 = arith.maximumf %69, %70 : vector<1x128xf32>
    %72 = arith.divf %67, %71 : vector<1x128xf32>
    %73 = math.log %72 : vector<1x128xf32>
    %74 = arith.addf %73, %57 : vector<1x128xf32>
    %75 = arith.negf %74 : vector<1x128xf32>
    %76 = math.exp %75 : vector<1x128xf32>
    %cst_35 = arith.constant 1.000000e+00 : f32
    %77 = vector.broadcast %cst_35 : f32 to vector<1x128xf32>
    %78 = arith.addf %77, %76 : vector<1x128xf32>
    %79 = arith.divf %77, %78 : vector<1x128xf32>
    %cst_36 = arith.constant 2.000000e+01 : f32
    %80 = vector.broadcast %cst_36 : f32 to vector<1x128xf32>
    %81 = arith.mulf %79, %80 : vector<1x128xf32>
    %cst_37 = arith.constant -1.000000e+01 : f32
    %82 = vector.broadcast %cst_37 : f32 to vector<1x128xf32>
    %83 = arith.addf %81, %82 : vector<1x128xf32>
    %84 = tpu.concatenate %27, %55, %83 in 0 : vector<1x128xf32>, vector<1x128xf32>, vector<1x128xf32> -> vector<3x128xf32>
    %c0_38 = arith.constant 0 : index
    %c0_39 = arith.constant 0 : index
    %85 = vector.load %arg6[%c0_38, %c0_39] : memref<3x128xf32, #tpu.memory_space<vmem>>, vector<3x128xf32>
    tpu.vector_store %arg6[%c0_38, %c0_39], %84 {strides = array<i32>} : memref<3x128xf32, #tpu.memory_space<vmem>>, vector<3x128xf32>,
    %c0_40 = arith.constant 0 : index
    %c0_41 = arith.constant 0 : index
    %86 = vector.load %arg5[%c0_40, %c0_41] : memref<1x128xf32, #tpu.memory_space<vmem>>, vector<1x128xf32>
    %87 = arith.negf %86 : vector<1x128xf32>
    %88 = math.exp %87 : vector<1x128xf32>
    %cst_42 = arith.constant 1.000000e+00 : f32
    %89 = vector.broadcast %cst_42 : f32 to vector<1x128xf32>
    %90 = arith.addf %89, %88 : vector<1x128xf32>
    %91 = arith.divf %89, %90 : vector<1x128xf32>
    %c0_43 = arith.constant 0 : index
    %c0_44 = arith.constant 0 : index
    %92 = vector.load %arg4[%c0_43, %c0_44] : memref<3x128xf32, #tpu.memory_space<vmem>>, vector<1x128xf32>
    %c1_45 = arith.constant 1 : index
    %c0_46 = arith.constant 0 : index
    %93 = vector.load %arg4[%c1_45, %c0_46] : memref<3x128xf32, #tpu.memory_space<vmem>>, vector<1x128xf32>
    %cst_47 = arith.constant 0.000000e+00 : f32
    %94 = vector.broadcast %cst_47 : f32 to vector<1x128xf32>
    %95 = arith.subf %94, %92 : vector<1x128xf32>
    %96 = arith.mulf %93, %93 : vector<1x128xf32>
    %97 = arith.mulf %95, %95 : vector<1x128xf32>
    %98 = arith.addf %96, %97 : vector<1x128xf32>
    %99 = math.sqrt %98 : vector<1x128xf32>
    %cst_48 = arith.constant 9.99999996E-13 : f32
    %100 = vector.broadcast %cst_48 : f32 to vector<1x128xf32>
    %101 = arith.maximumf %99, %100 : vector<1x128xf32>
    %cst_49 = arith.constant 1.000000e+00 : f32
    %102 = vector.broadcast %cst_49 : f32 to vector<1x128xf32>
    %103 = arith.divf %102, %101 : vector<1x128xf32>
    %104 = arith.mulf %93, %103 : vector<1x128xf32>
    %105 = arith.mulf %95, %103 : vector<1x128xf32>
    %cst_50 = arith.constant 0.000000e+00 : f32
    %106 = vector.broadcast %cst_50 : f32 to vector<1x128xf32>
    %107 = arith.mulf %104, %104 : vector<1x128xf32>
    %108 = arith.mulf %104, %105 : vector<1x128xf32>
    %109 = arith.mulf %105, %104 : vector<1x128xf32>
    %110 = arith.mulf %105, %105 : vector<1x128xf32>
    %cst_51 = arith.constant 1.000000e+00 : f32
    %111 = vector.broadcast %cst_51 : f32 to vector<1x128xf32>
    %112 = arith.subf %111, %91 : vector<1x128xf32>
    %c0_52 = arith.constant 0 : index
    %c0_53 = arith.constant 0 : index
    %113 = vector.load %arg3[%c0_52, %c0_53] : memref<9x128xf32, #tpu.memory_space<vmem>>, vector<1x128xf32>
    %114 = arith.mulf %113, %91 : vector<1x128xf32>
    %115 = arith.mulf %107, %112 : vector<1x128xf32>
    %116 = arith.addf %114, %115 : vector<1x128xf32>
    %c1_54 = arith.constant 1 : index
    %c0_55 = arith.constant 0 : index
    %117 = vector.load %arg3[%c1_54, %c0_55] : memref<9x128xf32, #tpu.memory_space<vmem>>, vector<1x128xf32>
    %118 = arith.mulf %117, %91 : vector<1x128xf32>
    %119 = arith.mulf %108, %112 : vector<1x128xf32>
    %120 = arith.addf %118, %119 : vector<1x128xf32>
    %c2_56 = arith.constant 2 : index
    %c0_57 = arith.constant 0 : index
    %121 = vector.load %arg3[%c2_56, %c0_57] : memref<9x128xf32, #tpu.memory_space<vmem>>, vector<1x128xf32>
    %122 = arith.mulf %121, %91 : vector<1x128xf32>
    %123 = arith.mulf %106, %112 : vector<1x128xf32>
    %124 = arith.addf %122, %123 : vector<1x128xf32>
    %c3 = arith.constant 3 : index
    %c0_58 = arith.constant 0 : index
    %125 = vector.load %arg3[%c3, %c0_58] : memref<9x128xf32, #tpu.memory_space<vmem>>, vector<1x128xf32>
    %126 = arith.mulf %125, %91 : vector<1x128xf32>
    %127 = arith.mulf %109, %112 : vector<1x128xf32>
    %128 = arith.addf %126, %127 : vector<1x128xf32>
    %c4 = arith.constant 4 : index
    %c0_59 = arith.constant 0 : index
    %129 = vector.load %arg3[%c4, %c0_59] : memref<9x128xf32, #tpu.memory_space<vmem>>, vector<1x128xf32>
    %130 = arith.mulf %129, %91 : vector<1x128xf32>
    %131 = arith.mulf %110, %112 : vector<1x128xf32>
    %132 = arith.addf %130, %131 : vector<1x128xf32>
    %c5 = arith.constant 5 : index
    %c0_60 = arith.constant 0 : index
    %133 = vector.load %arg3[%c5, %c0_60] : memref<9x128xf32, #tpu.memory_space<vmem>>, vector<1x128xf32>
    %134 = arith.mulf %133, %91 : vector<1x128xf32>
    %135 = arith.mulf %106, %112 : vector<1x128xf32>
    %136 = arith.addf %134, %135 : vector<1x128xf32>
    %c6 = arith.constant 6 : index
    %c0_61 = arith.constant 0 : index
    %137 = vector.load %arg3[%c6, %c0_61] : memref<9x128xf32, #tpu.memory_space<vmem>>, vector<1x128xf32>
    %138 = arith.mulf %137, %91 : vector<1x128xf32>
    %139 = arith.mulf %106, %112 : vector<1x128xf32>
    %140 = arith.addf %138, %139 : vector<1x128xf32>
    %c7 = arith.constant 7 : index
    %c0_62 = arith.constant 0 : index
    %141 = vector.load %arg3[%c7, %c0_62] : memref<9x128xf32, #tpu.memory_space<vmem>>, vector<1x128xf32>
    %142 = arith.mulf %141, %91 : vector<1x128xf32>
    %143 = arith.mulf %106, %112 : vector<1x128xf32>
    %144 = arith.addf %142, %143 : vector<1x128xf32>
    %c8 = arith.constant 8 : index
    %c0_63 = arith.constant 0 : index
    %145 = vector.load %arg3[%c8, %c0_63] : memref<9x128xf32, #tpu.memory_space<vmem>>, vector<1x128xf32>
    %146 = arith.mulf %145, %91 : vector<1x128xf32>
    %147 = arith.mulf %106, %112 : vector<1x128xf32>
    %148 = arith.addf %146, %147 : vector<1x128xf32>
    %149 = tpu.concatenate %116, %120, %124, %128, %132, %136, %140, %144, %148 in 0 : vector<1x128xf32>, vector<1x128xf32>, vector<1x128xf32>, vector<1x128xf32>, vector<1x128xf32>, vector<1x128xf32>, vector<1x128xf32>, vector<1x128xf32>, vector<1x128xf32> -> vector<9x128xf32>
    %c0_64 = arith.constant 0 : index
    %c0_65 = arith.constant 0 : index
    %150 = vector.load %arg7[%c0_64, %c0_65] : memref<9x128xf32, #tpu.memory_space<vmem>>, vector<9x128xf32>
    tpu.vector_store %arg7[%c0_64, %c0_65], %149 {strides = array<i32>} : memref<9x128xf32, #tpu.memory_space<vmem>>, vector<9x128xf32>,
    return
  }
  func.func @transform_0(%arg0: i32) -> (i32, i32) {
    %c0_i32 = arith.constant 0 : i32
    %c0_i32_0 = arith.constant 0 : i32
    return %c0_i32, %arg0 : i32, i32
  }
  func.func @transform_1(%arg0: i32) -> (i32, i32) {
    %c0_i32 = arith.constant 0 : i32
    %c0_i32_0 = arith.constant 0 : i32
    return %c0_i32, %arg0 : i32, i32
  }
  func.func @transform_2(%arg0: i32) -> (i32, i32) {
    %c0_i32 = arith.constant 0 : i32
    %c0_i32_0 = arith.constant 0 : i32
    return %c0_i32, %arg0 : i32, i32
  }
  func.func @transform_3(%arg0: i32) -> (i32, i32) {
    %c0_i32 = arith.constant 0 : i32
    %c0_i32_0 = arith.constant 0 : i32
    return %c0_i32, %arg0 : i32, i32
  }
  func.func @transform_4(%arg0: i32) -> (i32, i32) {
    %c0_i32 = arith.constant 0 : i32
    %c0_i32_0 = arith.constant 0 : i32
    return %c0_i32, %arg0 : i32, i32
  }
  func.func @transform_5(%arg0: i32) -> (i32, i32) {
    %c0_i32 = arith.constant 0 : i32
    %c0_i32_0 = arith.constant 0 : i32
    return %c0_i32, %arg0 : i32, i32
  }
  func.func @transform_6(%arg0: i32) -> (i32, i32) {
    %c0_i32 = arith.constant 0 : i32
    %c0_i32_0 = arith.constant 0 : i32
    return %c0_i32, %arg0 : i32, i32
  }
}

</mosaic_0001>

<llo_original>
// kernel: gaussian_update_layer_forward.6
$region0: #{gaussian_update_layer_forward.6}
  #allocation0 [shape = 'u32[]', space=smem, size = 0x4, offset = 0x4, fixed_abs, tag = 'smem constant byte address 0x4 - core index']
  #allocation1 [shape = 'u32[144,128]{1,0:T(1,128)}', space=vmem, size = 0x12000, scoped, tag = 'internal scratch']
  %s0 = inlined_call_operand.vmem [shape: f32[3,128], index: 0, kind: input, shape index: {}]
  %s1 = inlined_call_operand.vmem [shape: f32[9,128], index: 1, kind: input, shape index: {}]
  %s2 = inlined_call_operand.vmem [shape: f32[12,128], index: 2, kind: input, shape index: {}]
  %s3 = inlined_call_operand.vmem [shape: f32[12,128], index: 3, kind: output, shape index: {}]
  %s4 = sld [smem:[#allocation0]]
  $region22: #{gaussian_update_layer_forward.6} parent=0
    _
  %s6 = ssub.s32 1, %s4
  %s7 = scalar_select 0, %s6, %s4
  // Predicated region
  $region2: #{gaussian_update_layer_forward.6} parent=0 // pred_check
    _
  $region3: #{gaussian_update_layer_forward.6} parent=0 // pred_check_branch
    %9 = sbr.rel (0) target = $region5
  $region4: #{gaussian_update_layer_forward.6} parent=0 // pred_region
    _
  $region5: #{gaussian_update_layer_forward.6} parent=0 // pred_fallthru
    _
  // Predicated region
  $region6: #{gaussian_update_layer_forward.6} parent=0 // pred_check
    _
  $region7: #{gaussian_update_layer_forward.6} parent=0 // pred_check_branch
    %11 = sbr.rel (0) target = $region9
  $region8: #{gaussian_update_layer_forward.6} parent=0 // pred_region
    _
  $region9: #{gaussian_update_layer_forward.6} parent=0 // pred_fallthru
    _
  // Predicated region
  $region10: #{gaussian_update_layer_forward.6} parent=0 // pred_check
    _
  $region11: #{gaussian_update_layer_forward.6} parent=0 // pred_check_branch
    %13 = sbr.rel (0) target = $region13
  $region12: #{gaussian_update_layer_forward.6} parent=0 // pred_region
    _
  $region13: #{gaussian_update_layer_forward.6} parent=0 // pred_fallthru
    _
  %v14 = vld [vmem:[%s1] sm:$0x1]
  %v15 = vld [vmem:[%s1 + $0x3] sm:$0x1]
  %v16 = vld [vmem:[%s1 + $0x4] sm:$0x1]
  %v17 = vld [vmem:[%s1 + $0x6] sm:$0x1]
  %v18 = vld [vmem:[%s1 + $0x7] sm:$0x1]
  %v19 = vld [vmem:[%s1 + $0x8] sm:$0x1]
  %v20 = vmax.f32 %v14, 1e-09
  %v21 = vrsqrt.pop %v20
  %v22 = vmul.f32 %v20, %v21
  %vm23 = vcmp.eq.f32.partialorder %v20, inf
  %v24 = vsel %vm23, %v20, %v22
  %vm25 = vcmp.eq.f32.partialorder %v20, 0.0
  %v26 = vand.u32 %v20, 2147483648
  %v27 = vsel %vm25, %v26, %v24
  %v28 = vrcp.pop %v27
  %v29 = vmul.f32 1.0, %v28
  %v30 = vmul.f32 %v15, %v29
  %v31 = vmul.f32 %v17, %v29
  %v32 = vmul.f32 %v30, %v30
  %v33 = vsub.f32 %v16, %v32
  %v34 = vmax.f32 %v33, 1e-09
  %v35 = vrsqrt.pop %v34
  %v36 = vmul.f32 %v34, %v35
  %vm37 = vcmp.eq.f32.partialorder %v34, inf
  %v38 = vsel %vm37, %v34, %v36
  %vm39 = vcmp.eq.f32.partialorder %v34, 0.0
  %v40 = vand.u32 %v34, 2147483648
  %v41 = vsel %vm39, %v40, %v38
  %v42 = vrcp.pop %v41
  %v43 = vmul.f32 1.0, %v42
  %v44 = vmul.f32 %v31, %v30
  %v45 = vsub.f32 %v18, %v44
  %v46 = vmul.f32 %v45, %v43
  %v47 = vmul.f32 %v31, %v31
  %v48 = vsub.f32 %v19, %v47
  %v49 = vmul.f32 %v46, %v46
  %v50 = vsub.f32 %v48, %v49
  %v51 = vmax.f32 %v50, 1e-09
  %v52 = vrsqrt.pop %v51
  %v53 = vmul.f32 %v51, %v52
  %vm54 = vcmp.eq.f32.partialorder %v51, inf
  %v55 = vsel %vm54, %v51, %v53
  %vm56 = vcmp.eq.f32.partialorder %v51, 0.0
  %v57 = vand.u32 %v51, 2147483648
  %v58 = vsel %vm56, %v57, %v55
  %v59 = vld [vmem:[%s0] sm:$0x1]
  %v60 = vld [vmem:[%s0 + $0x1] sm:$0x1]
  %v61 = vld [vmem:[%s0 + $0x2] sm:$0x1]
  %v62 = vld [vmem:[%s2] sm:$0x1]
  %v63 = vld [vmem:[%s2 + $0x1] sm:$0x1]
  %v64 = vld [vmem:[%s2 + $0x2] sm:$0x1]
  %v65 = vmul.f32 %v27, %v62
  %v66 = vadd.f32 %v59, %v65
  %v67 = vmul.f32 %v30, %v62
  %v68 = vadd.f32 %v60, %v67
  %v69 = vmul.f32 %v41, %v63
  %v70 = vadd.f32 %v68, %v69
  %v71 = vmul.f32 %v31, %v62
  %v72 = vadd.f32 %v61, %v71
  %v73 = vmul.f32 %v46, %v63
  %v74 = vadd.f32 %v72, %v73
  %v75 = vmul.f32 %v58, %v64
  %v76 = vadd.f32 %v74, %v75
  %v77 = vld [vmem:[%s2 + $0x3] sm:$0x1]
  %v78 = vld [vmem:[%s2 + $0x4] sm:$0x1]
  %v79 = vld [vmem:[%s2 + $0x5] sm:$0x1]
  %v80 = vmul.f32 %v27, %v77
  %v81 = vadd.f32 %v59, %v80
  %v82 = vmul.f32 %v30, %v77
  %v83 = vadd.f32 %v60, %v82
  %v84 = vmul.f32 %v41, %v78
  %v85 = vadd.f32 %v83, %v84
  %v86 = vmul.f32 %v31, %v77
  %v87 = vadd.f32 %v61, %v86
  %v88 = vmul.f32 %v46, %v78
  %v89 = vadd.f32 %v87, %v88
  %v90 = vmul.f32 %v58, %v79
  %v91 = vadd.f32 %v89, %v90
  %v92 = vld [vmem:[%s2 + $0x6] sm:$0x1]
  %v93 = vld [vmem:[%s2 + $0x7] sm:$0x1]
  %v94 = vld [vmem:[%s2 + $0x8] sm:$0x1]
  %v95 = vmul.f32 %v27, %v92
  %v96 = vadd.f32 %v59, %v95
  %v97 = vmul.f32 %v30, %v92
  %v98 = vadd.f32 %v60, %v97
  %v99 = vmul.f32 %v41, %v93
  %v100 = vadd.f32 %v98, %v99
  %v101 = vmul.f32 %v31, %v92
  %v102 = vadd.f32 %v61, %v101
  %v103 = vmul.f32 %v46, %v93
  %v104 = vadd.f32 %v102, %v103
  %v105 = vmul.f32 %v58, %v94
  %v106 = vadd.f32 %v104, %v105
  %v107 = vld [vmem:[%s2 + $0x9] sm:$0x1]
  %v108 = vld [vmem:[%s2 + $0xa] sm:$0x1]
  %v109 = vld [vmem:[%s2 + $0xb] sm:$0x1]
  %v110 = vmul.f32 %v27, %v107
  %v111 = vadd.f32 %v59, %v110
  %v112 = vmul.f32 %v30, %v107
  %v113 = vadd.f32 %v60, %v112
  %v114 = vmul.f32 %v41, %v108
  %v115 = vadd.f32 %v113, %v114
  %v116 = vmul.f32 %v31, %v107
  %v117 = vadd.f32 %v61, %v116
  %v118 = vmul.f32 %v46, %v108
  %v119 = vadd.f32 %v117, %v118
  %v120 = vmul.f32 %v58, %v109
  %v121 = vadd.f32 %v119, %v120
  %v123 = vrot.slane %v70, 7
  %v126 = vrot.slane %v76, 6
  %v129 = vrot.slane %v81, 5
  %v132 = vrot.slane %v85, 4
  %v135 = vrot.slane %v91, 3
  %v138 = vrot.slane %v96, 2
  %v141 = vrot.slane %v100, 1
  %v144 = vrot.slane %v111, 7
  %v147 = vrot.slane %v115, 6
  %v150 = vrot.slane %v121, 5
  %vm152 = vcmask 1040384
  %v153 = vsel %vm152, %v66, %v123
  %vm154 = vcmask 1041408
  %v155 = vsel %vm154, %v153, %v126
  %vm156 = vcmask 1042432
  %v157 = vsel %vm156, %v155, %v129
  %vm158 = vcmask 1043456
  %v159 = vsel %vm158, %v157, %v132
  %vm160 = vcmask 1044480
  %v161 = vsel %vm160, %v159, %v135
  %vm162 = vcmask 1045504
  %v163 = vsel %vm162, %v161, %v138
  %vm164 = vcmask 1046528
  %v165 = vsel %vm164, %v163, %v141
  %v166 = vsel %vm152, %v106, %v144
  %v167 = vsel %vm154, %v166, %v147
  %v168 = vsel %vm156, %v167, %v150
  %169 = vst [vmem:[%s3] sm:$0xff] %v165
  %170 = vst [vmem:[%s3 + $0x8] sm:$0xf] %v168
  // Predicated region
  $region14: #{gaussian_update_layer_forward.6} parent=0 // pred_check
    _
  $region15: #{gaussian_update_layer_forward.6} parent=0 // pred_check_branch
    %172 = sbr.rel (0) target = $region17
  $region16: #{gaussian_update_layer_forward.6} parent=0 // pred_region
    _
  $region17: #{gaussian_update_layer_forward.6} parent=0 // pred_fallthru
    _
  // Predicated region
  $region18: #{gaussian_update_layer_forward.6} parent=0 // pred_check
    _
  $region19: #{gaussian_update_layer_forward.6} parent=0 // pred_check_branch
    %174 = sbr.rel (0) target = $region21
  $region20: #{gaussian_update_layer_forward.6} parent=0 // pred_region
    _
  $region21: #{gaussian_update_layer_forward.6} parent=0 // pred_fallthru
    _

// kernel: gaussian_update_layer_forward.7
$region0: #{gaussian_update_layer_forward.7}
  #allocation0 [shape = 'u32[]', space=smem, size = 0x4, offset = 0x4, fixed_abs, tag = 'smem constant byte address 0x4 - core index']
  #allocation1 [shape = 'u32[144,128]{1,0:T(1,128)}', space=vmem, size = 0x12000, scoped, tag = 'internal scratch']
  #allocation2 [shape = 'f32[32,128]{1,0:T(8,128)}', space=vmem, size = 0x4000, scoped, tag = 'scratch operand']
  %s0 = inlined_call_operand.vmem [shape: bf16[32,128], index: 0, kind: input, shape index: {}]
  %s1 = inlined_call_operand.vmem [shape: bf16[128,128], index: 1, kind: input, shape index: {}]
  %s2 = inlined_call_operand.vmem [shape: f32[1,128], index: 2, kind: input, shape index: {}]
  %s3 = inlined_call_operand.vmem [shape: f32[32,128], index: 3, kind: output, shape index: {}]
  %s4 = sld [smem:[#allocation0]]
  $region30: #{gaussian_update_layer_forward.7} parent=0
    _
  %s6 = ssub.s32 1, %s4
  %s7 = scalar_select 0, %s6, %s4
  // Predicated region
  $region2: #{gaussian_update_layer_forward.7} parent=0 // pred_check
    _
  $region3: #{gaussian_update_layer_forward.7} parent=0 // pred_check_branch
    %9 = sbr.rel (0) target = $region5
  $region4: #{gaussian_update_layer_forward.7} parent=0 // pred_region
    _
  $region5: #{gaussian_update_layer_forward.7} parent=0 // pred_fallthru
    _
  // Predicated region
  $region6: #{gaussian_update_layer_forward.7} parent=0 // pred_check
    _
  $region7: #{gaussian_update_layer_forward.7} parent=0 // pred_check_branch
    %11 = sbr.rel (0) target = $region9
  $region8: #{gaussian_update_layer_forward.7} parent=0 // pred_region
    _
  $region9: #{gaussian_update_layer_forward.7} parent=0 // pred_fallthru
    _
  // Predicated region
  $region10: #{gaussian_update_layer_forward.7} parent=0 // pred_check
    _
  $region11: #{gaussian_update_layer_forward.7} parent=0 // pred_check_branch
    %13 = sbr.rel (0) target = $region13
  $region12: #{gaussian_update_layer_forward.7} parent=0 // pred_region
    _
  $region13: #{gaussian_update_layer_forward.7} parent=0 // pred_fallthru
    _
  %p15 = scmp.eq.s32.totalorder 0, 0
  // Predicated region
  $region14: #{gaussian_update_layer_forward.7} parent=0 // pred_check
    %p16 = pneg %p15
  $region15: #{gaussian_update_layer_forward.7} parent=0 // pred_check_branch
    %18 = sbr.rel (%p16) target = $region17
  $region16: #{gaussian_update_layer_forward.7} parent=0 // pred_region
    %19 = vst [vmem:[#allocation2] sm:$0xff] 0.0
    %20 = vst [vmem:[#allocation2 + $0x8] sm:$0xff] 0.0
    %21 = vst [vmem:[#allocation2 + $0x10] sm:$0xff] 0.0
    %22 = vst [vmem:[#allocation2 + $0x18] sm:$0xff] 0.0
  $region17: #{gaussian_update_layer_forward.7} parent=0 // pred_fallthru
    _
  %v23 = vld [vmem:[#allocation2] sm:$0xff]
  %v24 = vld [vmem:[#allocation2 + $0x8] sm:$0xff]
  %v25 = vld [vmem:[#allocation2 + $0x10] sm:$0xff]
  %v26 = vld [vmem:[#allocation2 + $0x18] sm:$0xff]
  %v27 = vld [vmem:[%s0] sm:$0xf]
  %v28 = vld [vmem:[%s0 + $0x4] sm:$0xf]
  %v29 = vld [vmem:[%s0 + $0x8] sm:$0xf]
  %v30 = vld [vmem:[%s0 + $0xc] sm:$0xf]
  %v31 = vld [vmem:[%s1] sm:$0xf]
  %v32 = vld [vmem:[%s1 + $0x4] sm:$0xf]
  %v33 = vld [vmem:[%s1 + $0x8] sm:$0xf]
  %v34 = vld [vmem:[%s1 + $0xc] sm:$0xf]
  %v35 = vld [vmem:[%s1 + $0x10] sm:$0xf]
  %v36 = vld [vmem:[%s1 + $0x14] sm:$0xf]
  %v37 = vld [vmem:[%s1 + $0x18] sm:$0xf]
  %v38 = vld [vmem:[%s1 + $0x1c] sm:$0xf]
  %v39 = vld [vmem:[%s1 + $0x20] sm:$0xf]
  %v40 = vld [vmem:[%s1 + $0x24] sm:$0xf]
  %v41 = vld [vmem:[%s1 + $0x28] sm:$0xf]
  %v42 = vld [vmem:[%s1 + $0x2c] sm:$0xf]
  %v43 = vld [vmem:[%s1 + $0x30] sm:$0xf]
  %v44 = vld [vmem:[%s1 + $0x34] sm:$0xf]
  %v45 = vld [vmem:[%s1 + $0x38] sm:$0xf]
  %v46 = vld [vmem:[%s1 + $0x3c] sm:$0xf]
  %v51 = vunpack.c.l.b16 %v27
  %v52 = vunpack.c.l.b16 %v28
  %v53 = vunpack.c.l.b16 %v29
  %v54 = vunpack.c.l.b16 %v30
  %v55 = vpack.c.b16 %v52, %v51
  %v56 = vpack.c.b16 %v54, %v53
  %v75 = vunpack.c.l.b16 %v31
  %v76 = vunpack.c.l.b16 %v32
  %v77 = vunpack.c.l.b16 %v33
  %v78 = vunpack.c.l.b16 %v34
  %v79 = vunpack.c.l.b16 %v35
  %v80 = vunpack.c.l.b16 %v36
  %v81 = vunpack.c.l.b16 %v37
  %v82 = vunpack.c.l.b16 %v38
  %v83 = vunpack.c.l.b16 %v39
  %v84 = vunpack.c.l.b16 %v40
  %v85 = vunpack.c.l.b16 %v41
  %v86 = vunpack.c.l.b16 %v42
  %v87 = vunpack.c.l.b16 %v43
  %v88 = vunpack.c.l.b16 %v44
  %v89 = vunpack.c.l.b16 %v45
  %v90 = vunpack.c.l.b16 %v46
  %v91 = vpack.c.b16 %v76, %v75
  %v92 = vpack.c.b16 %v78, %v77
  %v93 = vpack.c.b16 %v80, %v79
  %v94 = vpack.c.b16 %v82, %v81
  %v95 = vpack.c.b16 %v84, %v83
  %v96 = vpack.c.b16 %v86, %v85
  %v97 = vpack.c.b16 %v88, %v87
  %v98 = vpack.c.b16 %v90, %v89
  %107 = vmatprep.subr.bf16.mxu0 0
  %108 = vmatpush1.bf16.msra.mxu0 %v98
  %109 = vmatprep.subr.bf16.mxu0 0
  %110 = vmatpush1.bf16.msra.mxu0 %v97
  %111 = vmatprep.subr.bf16.mxu0 0
  %112 = vmatpush1.bf16.msra.mxu0 %v96
  %113 = vmatprep.subr.bf16.mxu0 0
  %114 = vmatpush1.bf16.msra.mxu0 %v95
  %115 = vmatprep.subr.bf16.mxu0 0
  %116 = vmatpush1.bf16.msra.mxu0 %v94
  %117 = vmatprep.subr.bf16.mxu0 0
  %118 = vmatpush1.bf16.msra.mxu0 %v93
  %119 = vmatprep.subr.bf16.mxu0 0
  %120 = vmatpush1.bf16.msra.mxu0 %v92
  %121 = vmatprep.subr.bf16.mxu0 0
  %122 = vmatpush1.bf16.msra.mxu0 %v91
  %123 = vmatprep.subr.bf16.mxu0 0
  %124 = vmatpush2.bf16.msra.mxu0 0
  %125 = vmatprep.subr.bf16.mxu0 0
  %126 = vmatpush2.bf16.msra.mxu0 0
  %127 = vmatprep.subr.bf16.mxu0 0
  %128 = vmatpush2.bf16.msra.mxu0 0
  %129 = vmatprep.subr.bf16.mxu0 0
  %130 = vmatpush2.bf16.msra.mxu0 0
  %131 = vmatprep.subr.bf16.mxu0 0
  %132 = vmatpush2.bf16.msra.mxu0 0
  %133 = vmatprep.subr.bf16.mxu0 0
  %134 = vmatpush2.bf16.msra.mxu0 0
  %135 = vmatprep.subr.bf16.mxu0 0
  %136 = vmatpush2.bf16.msra.mxu0 0
  %137 = vmatprep.subr.bf16.mxu0 0
  %138 = vmatpush2.bf16.msra.mxu0 0
  %139 = vmatprep.mubr.bf16.mxu0 0
  %140 = vmatmul.mubr.bf16.gmra.mxu0 %v55
  %v141 = vpop.f32.mrf.mxu0
  %v142 = vadd.f32 0.0, %v141
  %v143 = vpop.f32.mrf.mxu0
  %v144 = vpop.f32.mrf.mxu0
  %v145 = vadd.f32 0.0, %v144
  %v146 = vpop.f32.mrf.mxu0
  %147 = vmatprep.mubr.bf16.mxu0 0
  %148 = vmatmul.mubr.bf16.gmra.mxu0 %v56
  %v149 = vpop.f32.mrf.mxu0
  %v150 = vadd.f32 0.0, %v149
  %v151 = vpop.f32.mrf.mxu0
  %v152 = vpop.f32.mrf.mxu0
  %v153 = vadd.f32 0.0, %v152
  %v154 = vpop.f32.mrf.mxu0
  %155 = vdwg.mxu0
  %v156 = vadd.f32 %v23, %v142
  %v157 = vadd.f32 %v24, %v145
  %v158 = vadd.f32 %v25, %v150
  %v159 = vadd.f32 %v26, %v153
  %160 = vst [vmem:[#allocation2] sm:$0xff] %v156
  %161 = vst [vmem:[#allocation2 + $0x8] sm:$0xff] %v157
  %162 = vst [vmem:[#allocation2 + $0x10] sm:$0xff] %v158
  %163 = vst [vmem:[#allocation2 + $0x18] sm:$0xff] %v159
  // Predicated region
  $region18: #{gaussian_update_layer_forward.7} parent=0 // pred_check
    %p164 = pneg %p15
  $region19: #{gaussian_update_layer_forward.7} parent=0 // pred_check_branch
    %166 = sbr.rel (%p164) target = $region21
  $region20: #{gaussian_update_layer_forward.7} parent=0 // pred_region
    %v167 = vld [vmem:[#allocation2] sm:$0xff]
    %v168 = vld [vmem:[#allocation2 + $0x8] sm:$0xff]
    %v169 = vld [vmem:[#allocation2 + $0x10] sm:$0xff]
    %v170 = vld [vmem:[#allocation2 + $0x18] sm:$0xff]
    %v171 = vld [vmem:[%s2] sm:$0x1]
    %v173 = vlaneseq
    %v174 = vshrl.u32 %v173, 7
    %v175 = vsub.s32 0, %v174
    %v176 = vrot.slane %v171, %v175
    %v178 = vadd.f32 %v167, %v176
    %v179 = vadd.f32 %v168, %v176
    %v180 = vadd.f32 %v169, %v176
    %v181 = vadd.f32 %v170, %v176
    %v182 = vmax.f32 %v178, 0.0
    %v183 = vmax.f32 %v179, 0.0
    %v184 = vmax.f32 %v180, 0.0
    %v185 = vmax.f32 %v181, 0.0
    %186 = vst [vmem:[%s3] sm:$0xff] %v182
    %187 = vst [vmem:[%s3 + $0x8] sm:$0xff] %v183
    %188 = vst [vmem:[%s3 + $0x10] sm:$0xff] %v184
    %189 = vst [vmem:[%s3 + $0x18] sm:$0xff] %v185
  $region21: #{gaussian_update_layer_forward.7} parent=0 // pred_fallthru
    _
  // Predicated region
  $region22: #{gaussian_update_layer_forward.7} parent=0 // pred_check
    _
  $region23: #{gaussian_update_layer_forward.7} parent=0 // pred_check_branch
    %191 = sbr.rel (0) target = $region25
  $region24: #{gaussian_update_layer_forward.7} parent=0 // pred_region
    _
  $region25: #{gaussian_update_layer_forward.7} parent=0 // pred_fallthru
    _
  // Predicated region
  $region26: #{gaussian_update_layer_forward.7} parent=0 // pred_check
    _
  $region27: #{gaussian_update_layer_forward.7} parent=0 // pred_check_branch
    %193 = sbr.rel (0) target = $region29
  $region28: #{gaussian_update_layer_forward.7} parent=0 // pred_region
    _
  $region29: #{gaussian_update_layer_forward.7} parent=0 // pred_fallthru
    _

// kernel: gaussian_update_layer_forward.8
$region0: #{gaussian_update_layer_forward.8}
  #allocation0 [shape = 'u32[]', space=smem, size = 0x4, offset = 0x4, fixed_abs, tag = 'smem constant byte address 0x4 - core index']
  #allocation1 [shape = 'u32[144,128]{1,0:T(1,128)}', space=vmem, size = 0x12000, scoped, tag = 'internal scratch']
  #allocation2 [shape = 'f32[32,128]{1,0:T(8,128)}', space=vmem, size = 0x4000, scoped, tag = 'scratch operand']
  %s0 = inlined_call_operand.vmem [shape: bf16[32,128], index: 0, kind: input, shape index: {}]
  %s1 = inlined_call_operand.vmem [shape: bf16[128,128], index: 1, kind: input, shape index: {}]
  %s2 = inlined_call_operand.vmem [shape: f32[1,128], index: 2, kind: input, shape index: {}]
  %s3 = inlined_call_operand.vmem [shape: f32[32,128], index: 3, kind: output, shape index: {}]
  %s4 = sld [smem:[#allocation0]]
  $region30: #{gaussian_update_layer_forward.8} parent=0
    _
  %s6 = ssub.s32 1, %s4
  %s7 = scalar_select 0, %s6, %s4
  // Predicated region
  $region2: #{gaussian_update_layer_forward.8} parent=0 // pred_check
    _
  $region3: #{gaussian_update_layer_forward.8} parent=0 // pred_check_branch
    %9 = sbr.rel (0) target = $region5
  $region4: #{gaussian_update_layer_forward.8} parent=0 // pred_region
    _
  $region5: #{gaussian_update_layer_forward.8} parent=0 // pred_fallthru
    _
  // Predicated region
  $region6: #{gaussian_update_layer_forward.8} parent=0 // pred_check
    _
  $region7: #{gaussian_update_layer_forward.8} parent=0 // pred_check_branch
    %11 = sbr.rel (0) target = $region9
  $region8: #{gaussian_update_layer_forward.8} parent=0 // pred_region
    _
  $region9: #{gaussian_update_layer_forward.8} parent=0 // pred_fallthru
    _
  // Predicated region
  $region10: #{gaussian_update_layer_forward.8} parent=0 // pred_check
    _
  $region11: #{gaussian_update_layer_forward.8} parent=0 // pred_check_branch
    %13 = sbr.rel (0) target = $region13
  $region12: #{gaussian_update_layer_forward.8} parent=0 // pred_region
    _
  $region13: #{gaussian_update_layer_forward.8} parent=0 // pred_fallthru
    _
  %p15 = scmp.eq.s32.totalorder 0, 0
  // Predicated region
  $region14: #{gaussian_update_layer_forward.8} parent=0 // pred_check
    %p16 = pneg %p15
  $region15: #{gaussian_update_layer_forward.8} parent=0 // pred_check_branch
    %18 = sbr.rel (%p16) target = $region17
  $region16: #{gaussian_update_layer_forward.8} parent=0 // pred_region
    %19 = vst [vmem:[#allocation2] sm:$0xff] 0.0
    %20 = vst [vmem:[#allocation2 + $0x8] sm:$0xff] 0.0
    %21 = vst [vmem:[#allocation2 + $0x10] sm:$0xff] 0.0
    %22 = vst [vmem:[#allocation2 + $0x18] sm:$0xff] 0.0
  $region17: #{gaussian_update_layer_forward.8} parent=0 // pred_fallthru
    _
  %v23 = vld [vmem:[#allocation2] sm:$0xff]
  %v24 = vld [vmem:[#allocation2 + $0x8] sm:$0xff]
  %v25 = vld [vmem:[#allocation2 + $0x10] sm:$0xff]
  %v26 = vld [vmem:[#allocation2 + $0x18] sm:$0xff]
  %v27 = vld [vmem:[%s0] sm:$0xf]
  %v28 = vld [vmem:[%s0 + $0x4] sm:$0xf]
  %v29 = vld [vmem:[%s0 + $0x8] sm:$0xf]
  %v30 = vld [vmem:[%s0 + $0xc] sm:$0xf]
  %v31 = vld [vmem:[%s1] sm:$0xf]
  %v32 = vld [vmem:[%s1 + $0x4] sm:$0xf]
  %v33 = vld [vmem:[%s1 + $0x8] sm:$0xf]
  %v34 = vld [vmem:[%s1 + $0xc] sm:$0xf]
  %v35 = vld [vmem:[%s1 + $0x10] sm:$0xf]
  %v36 = vld [vmem:[%s1 + $0x14] sm:$0xf]
  %v37 = vld [vmem:[%s1 + $0x18] sm:$0xf]
  %v38 = vld [vmem:[%s1 + $0x1c] sm:$0xf]
  %v39 = vld [vmem:[%s1 + $0x20] sm:$0xf]
  %v40 = vld [vmem:[%s1 + $0x24] sm:$0xf]
  %v41 = vld [vmem:[%s1 + $0x28] sm:$0xf]
  %v42 = vld [vmem:[%s1 + $0x2c] sm:$0xf]
  %v43 = vld [vmem:[%s1 + $0x30] sm:$0xf]
  %v44 = vld [vmem:[%s1 + $0x34] sm:$0xf]
  %v45 = vld [vmem:[%s1 + $0x38] sm:$0xf]
  %v46 = vld [vmem:[%s1 + $0x3c] sm:$0xf]
  %v51 = vunpack.c.l.b16 %v27
  %v52 = vunpack.c.l.b16 %v28
  %v53 = vunpack.c.l.b16 %v29
  %v54 = vunpack.c.l.b16 %v30
  %v55 = vpack.c.b16 %v52, %v51
  %v56 = vpack.c.b16 %v54, %v53
  %v75 = vunpack.c.l.b16 %v31
  %v76 = vunpack.c.l.b16 %v32
  %v77 = vunpack.c.l.b16 %v33
  %v78 = vunpack.c.l.b16 %v34
  %v79 = vunpack.c.l.b16 %v35
  %v80 = vunpack.c.l.b16 %v36
  %v81 = vunpack.c.l.b16 %v37
  %v82 = vunpack.c.l.b16 %v38
  %v83 = vunpack.c.l.b16 %v39
  %v84 = vunpack.c.l.b16 %v40
  %v85 = vunpack.c.l.b16 %v41
  %v86 = vunpack.c.l.b16 %v42
  %v87 = vunpack.c.l.b16 %v43
  %v88 = vunpack.c.l.b16 %v44
  %v89 = vunpack.c.l.b16 %v45
  %v90 = vunpack.c.l.b16 %v46
  %v91 = vpack.c.b16 %v76, %v75
  %v92 = vpack.c.b16 %v78, %v77
  %v93 = vpack.c.b16 %v80, %v79
  %v94 = vpack.c.b16 %v82, %v81
  %v95 = vpack.c.b16 %v84, %v83
  %v96 = vpack.c.b16 %v86, %v85
  %v97 = vpack.c.b16 %v88, %v87
  %v98 = vpack.c.b16 %v90, %v89
  %107 = vmatprep.subr.bf16.mxu0 0
  %108 = vmatpush1.bf16.msra.mxu0 %v98
  %109 = vmatprep.subr.bf16.mxu0 0
  %110 = vmatpush1.bf16.msra.mxu0 %v97
  %111 = vmatprep.subr.bf16.mxu0 0
  %112 = vmatpush1.bf16.msra.mxu0 %v96
  %113 = vmatprep.subr.bf16.mxu0 0
  %114 = vmatpush1.bf16.msra.mxu0 %v95
  %115 = vmatprep.subr.bf16.mxu0 0
  %116 = vmatpush1.bf16.msra.mxu0 %v94
  %117 = vmatprep.subr.bf16.mxu0 0
  %118 = vmatpush1.bf16.msra.mxu0 %v93
  %119 = vmatprep.subr.bf16.mxu0 0
  %120 = vmatpush1.bf16.msra.mxu0 %v92
  %121 = vmatprep.subr.bf16.mxu0 0
  %122 = vmatpush1.bf16.msra.mxu0 %v91
  %123 = vmatprep.subr.bf16.mxu0 0
  %124 = vmatpush2.bf16.msra.mxu0 0
  %125 = vmatprep.subr.bf16.mxu0 0
  %126 = vmatpush2.bf16.msra.mxu0 0
  %127 = vmatprep.subr.bf16.mxu0 0
  %128 = vmatpush2.bf16.msra.mxu0 0
  %129 = vmatprep.subr.bf16.mxu0 0
  %130 = vmatpush2.bf16.msra.mxu0 0
  %131 = vmatprep.subr.bf16.mxu0 0
  %132 = vmatpush2.bf16.msra.mxu0 0
  %133 = vmatprep.subr.bf16.mxu0 0
  %134 = vmatpush2.bf16.msra.mxu0 0
  %135 = vmatprep.subr.bf16.mxu0 0
  %136 = vmatpush2.bf16.msra.mxu0 0
  %137 = vmatprep.subr.bf16.mxu0 0
  %138 = vmatpush2.bf16.msra.mxu0 0
  %139 = vmatprep.mubr.bf16.mxu0 0
  %140 = vmatmul.mubr.bf16.gmra.mxu0 %v55
  %v141 = vpop.f32.mrf.mxu0
  %v142 = vadd.f32 0.0, %v141
  %v143 = vpop.f32.mrf.mxu0
  %v144 = vpop.f32.mrf.mxu0
  %v145 = vadd.f32 0.0, %v144
  %v146 = vpop.f32.mrf.mxu0
  %147 = vmatprep.mubr.bf16.mxu0 0
  %148 = vmatmul.mubr.bf16.gmra.mxu0 %v56
  %v149 = vpop.f32.mrf.mxu0
  %v150 = vadd.f32 0.0, %v149
  %v151 = vpop.f32.mrf.mxu0
  %v152 = vpop.f32.mrf.mxu0
  %v153 = vadd.f32 0.0, %v152
  %v154 = vpop.f32.mrf.mxu0
  %155 = vdwg.mxu0
  %v156 = vadd.f32 %v23, %v142
  %v157 = vadd.f32 %v24, %v145
  %v158 = vadd.f32 %v25, %v150
  %v159 = vadd.f32 %v26, %v153
  %160 = vst [vmem:[#allocation2] sm:$0xff] %v156
  %161 = vst [vmem:[#allocation2 + $0x8] sm:$0xff] %v157
  %162 = vst [vmem:[#allocation2 + $0x10] sm:$0xff] %v158
  %163 = vst [vmem:[#allocation2 + $0x18] sm:$0xff] %v159
  // Predicated region
  $region18: #{gaussian_update_layer_forward.8} parent=0 // pred_check
    %p164 = pneg %p15
  $region19: #{gaussian_update_layer_forward.8} parent=0 // pred_check_branch
    %166 = sbr.rel (%p164) target = $region21
  $region20: #{gaussian_update_layer_forward.8} parent=0 // pred_region
    %v167 = vld [vmem:[#allocation2] sm:$0xff]
    %v168 = vld [vmem:[#allocation2 + $0x8] sm:$0xff]
    %v169 = vld [vmem:[#allocation2 + $0x10] sm:$0xff]
    %v170 = vld [vmem:[#allocation2 + $0x18] sm:$0xff]
    %v171 = vld [vmem:[%s2] sm:$0x1]
    %v173 = vlaneseq
    %v174 = vshrl.u32 %v173, 7
    %v175 = vsub.s32 0, %v174
    %v176 = vrot.slane %v171, %v175
    %v178 = vadd.f32 %v167, %v176
    %v179 = vadd.f32 %v168, %v176
    %v180 = vadd.f32 %v169, %v176
    %v181 = vadd.f32 %v170, %v176
    %182 = vst [vmem:[%s3] sm:$0xff] %v178
    %183 = vst [vmem:[%s3 + $0x8] sm:$0xff] %v179
    %184 = vst [vmem:[%s3 + $0x10] sm:$0xff] %v180
    %185 = vst [vmem:[%s3 + $0x18] sm:$0xff] %v181
  $region21: #{gaussian_update_layer_forward.8} parent=0 // pred_fallthru
    _
  // Predicated region
  $region22: #{gaussian_update_layer_forward.8} parent=0 // pred_check
    _
  $region23: #{gaussian_update_layer_forward.8} parent=0 // pred_check_branch
    %187 = sbr.rel (0) target = $region25
  $region24: #{gaussian_update_layer_forward.8} parent=0 // pred_region
    _
  $region25: #{gaussian_update_layer_forward.8} parent=0 // pred_fallthru
    _
  // Predicated region
  $region26: #{gaussian_update_layer_forward.8} parent=0 // pred_check
    _
  $region27: #{gaussian_update_layer_forward.8} parent=0 // pred_check_branch
    %189 = sbr.rel (0) target = $region29
  $region28: #{gaussian_update_layer_forward.8} parent=0 // pred_region
    _
  $region29: #{gaussian_update_layer_forward.8} parent=0 // pred_fallthru
    _

// kernel: gaussian_update_layer_forward.11
$region0: #{gaussian_update_layer_forward.11}
  #allocation0 [shape = 'u32[]', space=smem, size = 0x4, offset = 0x4, fixed_abs, tag = 'smem constant byte address 0x4 - core index']
  #allocation1 [shape = 'u32[144,128]{1,0:T(1,128)}', space=vmem, size = 0x12000, scoped, tag = 'internal scratch']
  %s0 = inlined_call_operand.vmem [shape: f32[3,128], index: 0, kind: input, shape index: {}]
  %s1 = inlined_call_operand.vmem [shape: f32[3,128], index: 1, kind: input, shape index: {}]
  %s2 = inlined_call_operand.vmem [shape: f32[9,128], index: 2, kind: input, shape index: {}]
  %s3 = inlined_call_operand.vmem [shape: f32[3,128], index: 3, kind: input, shape index: {}]
  %s4 = inlined_call_operand.vmem [shape: f32[1,128], index: 4, kind: input, shape index: {}]
  %s5 = inlined_call_operand.vmem [shape: f32[3,128], index: 5, kind: output, shape index: {0}]
  %s6 = inlined_call_operand.vmem [shape: f32[9,128], index: 6, kind: output, shape index: {1}]
  %7 = xla_tuple %s5, %s6
  %s8 = sld [smem:[#allocation0]]
  $region38: #{gaussian_update_layer_forward.11} parent=0
    _
  %s10 = ssub.s32 1, %s8
  %s11 = scalar_select 0, %s10, %s8
  // Predicated region
  $region2: #{gaussian_update_layer_forward.11} parent=0 // pred_check
    _
  $region3: #{gaussian_update_layer_forward.11} parent=0 // pred_check_branch
    %13 = sbr.rel (0) target = $region5
  $region4: #{gaussian_update_layer_forward.11} parent=0 // pred_region
    _
  $region5: #{gaussian_update_layer_forward.11} parent=0 // pred_fallthru
    _
  // Predicated region
  $region6: #{gaussian_update_layer_forward.11} parent=0 // pred_check
    _
  $region7: #{gaussian_update_layer_forward.11} parent=0 // pred_check_branch
    %15 = sbr.rel (0) target = $region9
  $region8: #{gaussian_update_layer_forward.11} parent=0 // pred_region
    _
  $region9: #{gaussian_update_layer_forward.11} parent=0 // pred_fallthru
    _
  // Predicated region
  $region10: #{gaussian_update_layer_forward.11} parent=0 // pred_check
    _
  $region11: #{gaussian_update_layer_forward.11} parent=0 // pred_check_branch
    %17 = sbr.rel (0) target = $region13
  $region12: #{gaussian_update_layer_forward.11} parent=0 // pred_region
    _
  $region13: #{gaussian_update_layer_forward.11} parent=0 // pred_fallthru
    _
  // Predicated region
  $region14: #{gaussian_update_layer_forward.11} parent=0 // pred_check
    _
  $region15: #{gaussian_update_layer_forward.11} parent=0 // pred_check_branch
    %19 = sbr.rel (0) target = $region17
  $region16: #{gaussian_update_layer_forward.11} parent=0 // pred_region
    _
  $region17: #{gaussian_update_layer_forward.11} parent=0 // pred_fallthru
    _
  // Predicated region
  $region18: #{gaussian_update_layer_forward.11} parent=0 // pred_check
    _
  $region19: #{gaussian_update_layer_forward.11} parent=0 // pred_check_branch
    %21 = sbr.rel (0) target = $region21
  $region20: #{gaussian_update_layer_forward.11} parent=0 // pred_region
    _
  $region21: #{gaussian_update_layer_forward.11} parent=0 // pred_fallthru
    _
  %v22 = vld [vmem:[%s0] sm:$0x1]
  %v23 = vld [vmem:[%s1] sm:$0x1]
  %v24 = vsub.f32 %v22, -50.0
  %v25 = vrcp.pop 100.0
  %v26 = vmul.f32 %v24, %v25
  %v27 = vmax.f32 %v26, 0.0
  %v28 = vmin.f32 %v27, 1.0
  %v29 = vmax.f32 %v28, 1e-05
  %v30 = vsub.f32 1.0, %v28
  %v31 = vmax.f32 %v30, 1e-05
  %v32 = vrcp.pop %v31
  %v33 = vmul.f32 %v29, %v32
  %v34 = vlog2.pop %v33
  %v35 = vmul.f32 %v34, 0.6931472
  %v36 = vadd.f32 %v35, %v23
  %v37 = vxor.u32 %v36, 2147483648
  %v38 = vmul.f32 %v37, 1.442695
  %v39 = vpow.pop %v38
  %v40 = vadd.f32 %v39, 1.0
  %v41 = vrcp.pop %v40
  %v42 = vmul.f32 1.0, %v41
  %v43 = vmul.f32 %v42, 100.0
  %v44 = vadd.f32 %v43, -50.0
  %v45 = vld [vmem:[%s0 + $0x1] sm:$0x1]
  %v46 = vld [vmem:[%s1 + $0x1] sm:$0x1]
  %v47 = vsub.f32 %v45, -50.0
  %v48 = vmul.f32 %v47, %v25
  %v49 = vmax.f32 %v48, 0.0
  %v50 = vmin.f32 %v49, 1.0
  %v51 = vmax.f32 %v50, 1e-05
  %v52 = vsub.f32 1.0, %v50
  %v53 = vmax.f32 %v52, 1e-05
  %v54 = vrcp.pop %v53
  %v55 = vmul.f32 %v51, %v54
  %v56 = vlog2.pop %v55
  %v57 = vmul.f32 %v56, 0.6931472
  %v58 = vadd.f32 %v57, %v46
  %v59 = vxor.u32 %v58, 2147483648
  %v60 = vmul.f32 %v59, 1.442695
  %v61 = vpow.pop %v60
  %v62 = vadd.f32 %v61, 1.0
  %v63 = vrcp.pop %v62
  %v64 = vmul.f32 1.0, %v63
  %v65 = vmul.f32 %v64, 100.0
  %v66 = vadd.f32 %v65, -50.0
  %v67 = vld [vmem:[%s0 + $0x2] sm:$0x1]
  %v68 = vld [vmem:[%s1 + $0x2] sm:$0x1]
  %v69 = vsub.f32 %v67, -10.0
  %v70 = vrcp.pop 20.0
  %v71 = vmul.f32 %v69, %v70
  %v72 = vmax.f32 %v71, 0.0
  %v73 = vmin.f32 %v72, 1.0
  %v74 = vmax.f32 %v73, 1e-05
  %v75 = vsub.f32 1.0, %v73
  %v76 = vmax.f32 %v75, 1e-05
  %v77 = vrcp.pop %v76
  %v78 = vmul.f32 %v74, %v77
  %v79 = vlog2.pop %v78
  %v80 = vmul.f32 %v79, 0.6931472
  %v81 = vadd.f32 %v80, %v68
  %v82 = vxor.u32 %v81, 2147483648
  %v83 = vmul.f32 %v82, 1.442695
  %v84 = vpow.pop %v83
  %v85 = vadd.f32 %v84, 1.0
  %v86 = vrcp.pop %v85
  %v87 = vmul.f32 1.0, %v86
  %v88 = vmul.f32 %v87, 20.0
  %v89 = vadd.f32 %v88, -10.0
  %v91 = vrot.slane %v66, 7
  %v94 = vrot.slane %v89, 6
  %vm96 = vcmask 1040384
  %v97 = vsel %vm96, %v44, %v91
  %vm98 = vcmask 1041408
  %v99 = vsel %vm98, %v97, %v94
  %100 = vst [vmem:[%s5] sm:$0x7] %v99
  %v101 = vld [vmem:[%s4] sm:$0x1]
  %v102 = vxor.u32 %v101, 2147483648
  %v103 = vmul.f32 %v102, 1.442695
  %v104 = vpow.pop %v103
  %v105 = vadd.f32 %v104, 1.0
  %v106 = vrcp.pop %v105
  %v107 = vmul.f32 1.0, %v106
  %v108 = vld [vmem:[%s3] sm:$0x1]
  %v109 = vld [vmem:[%s3 + $0x1] sm:$0x1]
  %v110 = vsub.f32 0.0, %v108
  %v111 = vmul.f32 %v109, %v109
  %v112 = vmul.f32 %v110, %v110
  %v113 = vadd.f32 %v111, %v112
  %v114 = vrsqrt.pop %v113
  %v115 = vmul.f32 %v113, %v114
  %vm116 = vcmp.eq.f32.partialorder %v113, inf
  %v117 = vsel %vm116, %v113, %v115
  %vm118 = vcmp.eq.f32.partialorder %v113, 0.0
  %v119 = vand.u32 %v113, 2147483648
  %v120 = vsel %vm118, %v119, %v117
  %v121 = vmax.f32 %v120, 1e-12
  %v122 = vrcp.pop %v121
  %v123 = vmul.f32 1.0, %v122
  %v124 = vmul.f32 %v109, %v123
  %v125 = vmul.f32 %v110, %v123
  %v126 = vmul.f32 %v124, %v124
  %v127 = vmul.f32 %v124, %v125
  %v128 = vmul.f32 %v125, %v125
  %v129 = vsub.f32 1.0, %v107
  %v130 = vld [vmem:[%s2] sm:$0x1]
  %v131 = vmul.f32 %v130, %v107
  %v132 = vmul.f32 %v126, %v129
  %v133 = vadd.f32 %v131, %v132
  %v134 = vld [vmem:[%s2 + $0x1] sm:$0x1]
  %v135 = vmul.f32 %v134, %v107
  %v136 = vmul.f32 %v127, %v129
  %v137 = vadd.f32 %v135, %v136
  %v138 = vld [vmem:[%s2 + $0x2] sm:$0x1]
  %v139 = vmul.f32 %v138, %v107
  %v140 = vmul.f32 %v129, 0.0
  %v141 = vadd.f32 %v139, %v140
  %v142 = vld [vmem:[%s2 + $0x3] sm:$0x1]
  %v143 = vmul.f32 %v142, %v107
  %v144 = vadd.f32 %v143, %v136
  %v145 = vld [vmem:[%s2 + $0x4] sm:$0x1]
  %v146 = vmul.f32 %v145, %v107
  %v147 = vmul.f32 %v128, %v129
  %v148 = vadd.f32 %v146, %v147
  %v149 = vld [vmem:[%s2 + $0x5] sm:$0x1]
  %v150 = vmul.f32 %v149, %v107
  %v151 = vadd.f32 %v150, %v140
  %v152 = vld [vmem:[%s2 + $0x6] sm:$0x1]
  %v153 = vmul.f32 %v152, %v107
  %v154 = vadd.f32 %v153, %v140
  %v155 = vld [vmem:[%s2 + $0x7] sm:$0x1]
  %v156 = vmul.f32 %v155, %v107
  %v157 = vadd.f32 %v156, %v140
  %v158 = vld [vmem:[%s2 + $0x8] sm:$0x1]
  %v159 = vmul.f32 %v158, %v107
  %v160 = vadd.f32 %v159, %v140
  %v162 = vrot.slane %v137, 7
  %v165 = vrot.slane %v141, 6
  %v168 = vrot.slane %v144, 5
  %v171 = vrot.slane %v148, 4
  %v174 = vrot.slane %v151, 3
  %v177 = vrot.slane %v154, 2
  %v180 = vrot.slane %v157, 1
  %v182 = vsel %vm96, %v133, %v162
  %v183 = vsel %vm98, %v182, %v165
  %vm184 = vcmask 1042432
  %v185 = vsel %vm184, %v183, %v168
  %vm186 = vcmask 1043456
  %v187 = vsel %vm186, %v185, %v171
  %vm188 = vcmask 1044480
  %v189 = vsel %vm188, %v187, %v174
  %vm190 = vcmask 1045504
  %v191 = vsel %vm190, %v189, %v177
  %vm192 = vcmask 1046528
  %v193 = vsel %vm192, %v191, %v180
  %194 = vst [vmem:[%s6] sm:$0xff] %v193
  %195 = vst [vmem:[%s6 + $0x8] sm:$0x1] %v160
  // Predicated region
  $region22: #{gaussian_update_layer_forward.11} parent=0 // pred_check
    _
  $region23: #{gaussian_update_layer_forward.11} parent=0 // pred_check_branch
    %197 = sbr.rel (0) target = $region25
  $region24: #{gaussian_update_layer_forward.11} parent=0 // pred_region
    _
  $region25: #{gaussian_update_layer_forward.11} parent=0 // pred_fallthru
    _
  // Predicated region
  $region26: #{gaussian_update_layer_forward.11} parent=0 // pred_check
    _
  $region27: #{gaussian_update_layer_forward.11} parent=0 // pred_check_branch
    %199 = sbr.rel (0) target = $region29
  $region28: #{gaussian_update_layer_forward.11} parent=0 // pred_region
    _
  $region29: #{gaussian_update_layer_forward.11} parent=0 // pred_fallthru
    _
  // Predicated region
  $region30: #{gaussian_update_layer_forward.11} parent=0 // pred_check
    _
  $region31: #{gaussian_update_layer_forward.11} parent=0 // pred_check_branch
    %201 = sbr.rel (0) target = $region33
  $region32: #{gaussian_update_layer_forward.11} parent=0 // pred_region
    _
  $region33: #{gaussian_update_layer_forward.11} parent=0 // pred_fallthru
    _
  // Predicated region
  $region34: #{gaussian_update_layer_forward.11} parent=0 // pred_check
    _
  $region35: #{gaussian_update_layer_forward.11} parent=0 // pred_check_branch
    %203 = sbr.rel (0) target = $region37
  $region36: #{gaussian_update_layer_forward.11} parent=0 // pred_region
    _
  $region37: #{gaussian_update_layer_forward.11} parent=0 // pred_fallthru
    _

</llo_original>
